<compile_context>
chip_gen: v6e
topology: v6e:2x2x1
jax: 0.10.0
libtpu: 0.0.40
codegen_flags: <defaults>
</compile_context>

<pallas_src>
import functools

import jax
import jax.numpy as jnp
from jax.experimental import pallas as pl
from jax.experimental.pallas import tpu as pltpu

_BN_EPS = 1e-5


def _round_up(x, m):
    return ((x + m - 1) // m) * m


# --------------------------------------------------------------------------- #
# Fused kernel: feat = relu(x@W1 + b1); h = relu(feat@W2 + b2); pred = h@W3+b3 #
# --------------------------------------------------------------------------- #
def _projection_fused_kernel(x_ref, w1_ref, b1_ref, w2_ref, b2_ref, w3_ref, b3_ref,
                             feat_ref, pred_ref):
    cdt = w1_ref.dtype  # matmul compute dtype (bf16 by default, f32 optional)

    # Layer 1: Linear(1024 -> 512) [+ folded BN] + ReLU
    h1 = jnp.dot(x_ref[...], w1_ref[...], preferred_element_type=jnp.float32)
    h1 = jnp.maximum(h1 + b1_ref[...], 0.0)
    feat_ref[...] = h1.astype(feat_ref.dtype)

    # Layer 2: Linear(512 -> 256) [+ folded BN] + ReLU
    h2 = jnp.dot(h1.astype(cdt), w2_ref[...], preferred_element_type=jnp.float32)
    h2 = jnp.maximum(h2 + b2_ref[...], 0.0)

    # Layer 3: Linear(256 -> nclass_padded), no norm / activation
    p = jnp.dot(h2.astype(cdt), w3_ref[...], preferred_element_type=jnp.float32)
    pred_ref[...] = (p + b3_ref[...]).astype(pred_ref.dtype)


# --------------------------------------------------------------------------- #
# Parameter preparation: fold BN, pad last layer lane-dense, cast weights      #
# --------------------------------------------------------------------------- #
def prepare_params(params, nclass, compute_dtype=jnp.bfloat16):
    prepped = []
    for p in params:
        w = p["w"].astype(jnp.float32)
        b = p["b"].astype(jnp.float32)
        if "gamma" in p:  # eval-mode BatchNorm1d folded into the affine
            scale = p["gamma"] / jnp.sqrt(p["running_var"] + _BN_EPS)
            w = w * scale[None, :]
            b = (b - p["running_mean"]) * scale + p["beta"]
        prepped.append({"w": w.astype(compute_dtype),
                        "b": b[None, :].astype(jnp.float32)})

    # Lane-dense final output: pad nclass up to a multiple of 128 lanes.
    n_pad = _round_up(max(nclass, 1), 128)
    w3, b3 = prepped[2]["w"], prepped[2]["b"]
    if n_pad != nclass:
        w3 = jnp.pad(w3, ((0, 0), (0, n_pad - nclass)))
        b3 = jnp.pad(b3, ((0, 0), (0, n_pad - nclass)))
    prepped[2] = {"w": w3, "b": b3}
    return prepped, n_pad


# --------------------------------------------------------------------------- #
# Forward wrapper                                                              #
# --------------------------------------------------------------------------- #
def projection_forward(x, params, nclass, *, compute_dtype=jnp.bfloat16, tm=128):
    """Pallas forward pass of Projection. Returns (pred, feat).

    tm=128 is safe on all generations (matches the v5e MXU row granule);
    v6e / v7x can use tm=256 for large batches.
    """
    M, K = x.shape
    out_dtype = x.dtype
    prepped, n_pad = prepare_params(params, nclass, compute_dtype)

    w1, b1 = prepped[0]["w"], prepped[0]["b"]
    w2, b2 = prepped[1]["w"], prepped[1]["b"]
    w3, b3 = prepped[2]["w"], prepped[2]["b"]
    d1, d2 = w1.shape[1], w2.shape[1]

    # Pad batch to a tile multiple (min 8 rows) instead of shrinking the tile.
    tm_eff = min(tm, _round_up(M, 8))
    m_pad = _round_up(M, tm_eff)
    x_p = x if m_pad == M else jnp.pad(x, ((0, m_pad - M), (0, 0)))
    x_p = x_p.astype(compute_dtype)

    rows = lambda i: (i, 0)      # batch-tiled operands / outputs
    const = lambda i: (0, 0)     # VMEM-resident weights / biases

    feat_p, pred_p = pl.pallas_call(
        _projection_fused_kernel,
        out_shape=(jax.ShapeDtypeStruct((m_pad, d1), out_dtype),
                   jax.ShapeDtypeStruct((m_pad, n_pad), out_dtype)),
        grid_spec=pltpu.PrefetchScalarGridSpec(
            num_scalar_prefetch=0,
            grid=(m_pad // tm_eff,),
            in_specs=[
                pl.BlockSpec((tm_eff, K), rows),   # x tile
                pl.BlockSpec((K, d1), const),      # W1 (BN-folded, bf16)
                pl.BlockSpec((1, d1), const),      # b1 (f32)
                pl.BlockSpec((d1, d2), const),     # W2
                pl.BlockSpec((1, d2), const),      # b2
                pl.BlockSpec((d2, n_pad), const),  # W3 (lane-padded)
                pl.BlockSpec((1, n_pad), const),   # b3 (lane-padded)
            ],
            out_specs=[
                pl.BlockSpec((tm_eff, d1), rows),     # feat
                pl.BlockSpec((tm_eff, n_pad), rows),  # pred (lane-dense)
            ],
        ),
        compiler_params=pltpu.CompilerParams(
            dimension_semantics=("parallel",),  # M axis shards across v7x's 2 TCs
        ),
    )(x_p, w1, b1, w2, b2, w3, b3)

    pred = pred_p[:M, :nclass]
    feat = feat_p[:M, :]
    return pred, feat


# --------------------------------------------------------------------------- #
# Synthetic params + pure-JAX reference (eval-mode torch semantics)            #
# --------------------------------------------------------------------------- #
def init_projection_params(key, nclass, dtype=jnp.float32):
    dims = [(1024, 512), (512, 256), (256, nclass)]
    params = []
    for i, (din, dout) in enumerate(dims):
        k_w, k_b, k_g, k_be, k_m, k_v, key = jax.random.split(key, 7)
        w = jax.random.normal(k_w, (din, dout), dtype) * (1.0 / jnp.sqrt(din))
        b = jax.random.normal(k_b, (dout,), dtype) * 0.02
        layer = {"w": w, "b": b}
        if i < 2:  # first two MLP blocks carry BatchNorm1d
            layer["gamma"] = 1.0 + 0.1 * jax.random.normal(k_g, (dout,), dtype)
            layer["beta"] = 0.1 * jax.random.normal(k_be, (dout,), dtype)
            layer["running_mean"] = 0.1 * jax.random.normal(k_m, (dout,), dtype)
            layer["running_var"] = 1.0 + 0.1 * jax.random.uniform(k_v, (dout,), dtype)
        params.append(layer)
    return params


def projection_reference(x, params):
    def block(h, p, act):
        z = jnp.dot(h, p["w"], precision=jax.lax.Precision.HIGHEST) + p["b"]
        if "gamma" in p:
            z = (z - p["running_mean"]) / jnp.sqrt(p["running_var"] + _BN_EPS)
            z = z * p["gamma"] + p["beta"]
        return jnp.maximum(z, 0.0) if act else z

    feat = block(x, params[0], True)
    h = block(feat, params[1], True)
    pred = block(h, params[2], False)
    return pred, feat


if __name__ == "__main__":
    key = jax.random.PRNGKey(0)
    k_x, k_p = jax.random.split(key)

    batch, in_dim, nclass = 8, 1024, 16
    x = jax.random.normal(k_x, (batch, in_dim), jnp.float32)
    params = init_projection_params(k_p, nclass)

    pred_ref, feat_ref = projection_reference(x, params)

    # f32 compute path: tight numerical check of the fused kernel.
    pred32, feat32 = projection_forward(x, params, nclass, compute_dtype=jnp.float32)
    jax.block_until_ready((pred32, feat32))
    assert pred32.shape == (batch, nclass) and feat32.shape == (batch, 512)
    assert jnp.allclose(pred32, pred_ref, atol=2e-3, rtol=2e-3)
    assert jnp.allclose(feat32, feat_ref, atol=2e-3, rtol=2e-3)

    # bf16 compute path (production default): loose check vs f32 reference.
    pred, feat = projection_forward(x, params, nclass)  # compute_dtype=bfloat16
    jax.block_until_ready((pred, feat))
    assert pred.shape == (batch, nclass) and feat.shape == (batch, 512)
    assert jnp.allclose(pred, pred_ref, atol=5e-2, rtol=5e-2)
    assert jnp.allclose(feat, feat_ref, atol=5e-2, rtol=5e-2)

    print("KERNEL_OK")
</pallas_src>

<mosaic_0001>
module attributes {stable_mosaic.version = 11 : i64} {
  func.func @_projection_fused_kernel(%arg0: i32, %arg1: memref<8x1024xf32, #tpu.memory_space<vmem>>, %arg2: memref<1024x512xf32, #tpu.memory_space<vmem>>, %arg3: memref<1x512xf32, #tpu.memory_space<vmem>>, %arg4: memref<512x256xf32, #tpu.memory_space<vmem>>, %arg5: memref<1x256xf32, #tpu.memory_space<vmem>>, %arg6: memref<256x128xf32, #tpu.memory_space<vmem>>, %arg7: memref<1x128xf32, #tpu.memory_space<vmem>>, %arg8: memref<8x512xf32, #tpu.memory_space<vmem>>, %arg9: memref<8x128xf32, #tpu.memory_space<vmem>>) attributes {dimension_semantics = [#tpu.dimension_semantics<parallel>], iteration_bounds = array<i64: 1>, scalar_prefetch = 0 : i64, scratch_operands = 0 : i64, tpu.core_type = #tpu.core_type<tc>, window_params = [{transform_indices = @transform_0, window_bounds = array<i64: 8, 1024>}, {pipeline_mode = #tpu.pipeline_mode<synchronous>, transform_indices = @transform_1, window_bounds = array<i64: 1024, 512>}, {pipeline_mode = #tpu.pipeline_mode<synchronous>, transform_indices = @transform_2, window_bounds = array<i64: 1, 512>}, {pipeline_mode = #tpu.pipeline_mode<synchronous>, transform_indices = @transform_3, window_bounds = array<i64: 512, 256>}, {pipeline_mode = #tpu.pipeline_mode<synchronous>, transform_indices = @transform_4, window_bounds = array<i64: 1, 256>}, {pipeline_mode = #tpu.pipeline_mode<synchronous>, transform_indices = @transform_5, window_bounds = array<i64: 256, 128>}, {pipeline_mode = #tpu.pipeline_mode<synchronous>, transform_indices = @transform_6, window_bounds = array<i64: 1, 128>}, {transform_indices = @transform_7, window_bounds = array<i64: 8, 512>}, {transform_indices = @transform_8, window_bounds = array<i64: 8, 128>}]} {
    %c0 = arith.constant 0 : index
    %c0_0 = arith.constant 0 : index
    %0 = vector.load %arg1[%c0, %c0_0] : memref<8x1024xf32, #tpu.memory_space<vmem>>, vector<8x1024xf32>
    %c0_1 = arith.constant 0 : index
    %c0_2 = arith.constant 0 : index
    %1 = vector.load %arg2[%c0_1, %c0_2] : memref<1024x512xf32, #tpu.memory_space<vmem>>, vector<1024x512xf32>
    %cst = arith.constant dense<0.000000e+00> : vector<8x512xf32>
    %2 = tpu.matmul %0, %1, %cst {dimension_numbers = #tpu.dot_dimension_numbers<[1], [0], [0], [1], [0, 0, 1, 1], [], []>} : vector<8x1024xf32>, vector<1024x512xf32>, vector<8x512xf32> -> vector<8x512xf32>
    %c0_3 = arith.constant 0 : index
    %c0_4 = arith.constant 0 : index
    %3 = vector.load %arg3[%c0_3, %c0_4] : memref<1x512xf32, #tpu.memory_space<vmem>>, vector<1x512xf32>
    %4 = vector.broadcast %3 : vector<1x512xf32> to vector<8x512xf32>
    %5 = arith.addf %2, %4 : vector<8x512xf32>
    %cst_5 = arith.constant 0.000000e+00 : f32
    %6 = vector.broadcast %cst_5 : f32 to vector<8x512xf32>
    %7 = arith.maximumf %5, %6 : vector<8x512xf32>
    %c0_6 = arith.constant 0 : index
    %c0_7 = arith.constant 0 : index
    %8 = vector.load %arg8[%c0_6, %c0_7] : memref<8x512xf32, #tpu.memory_space<vmem>>, vector<8x512xf32>
    tpu.vector_store %arg8[%c0_6, %c0_7], %7 {strides = array<i32>} : memref<8x512xf32, #tpu.memory_space<vmem>>, vector<8x512xf32>,
    %c0_8 = arith.constant 0 : index
    %c0_9 = arith.constant 0 : index
    %9 = vector.load %arg4[%c0_8, %c0_9] : memref<512x256xf32, #tpu.memory_space<vmem>>, vector<512x256xf32>
    %cst_10 = arith.constant dense<0.000000e+00> : vector<8x256xf32>
    %10 = tpu.matmul %7, %9, %cst_10 {dimension_numbers = #tpu.dot_dimension_numbers<[1], [0], [0], [1], [0, 0, 1, 1], [], []>} : vector<8x512xf32>, vector<512x256xf32>, vector<8x256xf32> -> vector<8x256xf32>
    %c0_11 = arith.constant 0 : index
    %c0_12 = arith.constant 0 : index
    %11 = vector.load %arg5[%c0_11, %c0_12] : memref<1x256xf32, #tpu.memory_space<vmem>>, vector<1x256xf32>
    %12 = vector.broadcast %11 : vector<1x256xf32> to vector<8x256xf32>
    %13 = arith.addf %10, %12 : vector<8x256xf32>
    %cst_13 = arith.constant 0.000000e+00 : f32
    %14 = vector.broadcast %cst_13 : f32 to vector<8x256xf32>
    %15 = arith.maximumf %13, %14 : vector<8x256xf32>
    %c0_14 = arith.constant 0 : index
    %c0_15 = arith.constant 0 : index
    %16 = vector.load %arg6[%c0_14, %c0_15] : memref<256x128xf32, #tpu.memory_space<vmem>>, vector<256x128xf32>
    %cst_16 = arith.constant dense<0.000000e+00> : vector<8x128xf32>
    %17 = tpu.matmul %15, %16, %cst_16 {dimension_numbers = #tpu.dot_dimension_numbers<[1], [0], [0], [1], [0, 0, 1, 1], [], []>} : vector<8x256xf32>, vector<256x128xf32>, vector<8x128xf32> -> vector<8x128xf32>
    %c0_17 = arith.constant 0 : index
    %c0_18 = arith.constant 0 : index
    %18 = vector.load %arg7[%c0_17, %c0_18] : memref<1x128xf32, #tpu.memory_space<vmem>>, vector<1x128xf32>
    %19 = vector.broadcast %18 : vector<1x128xf32> to vector<8x128xf32>
    %20 = arith.addf %17, %19 : vector<8x128xf32>
    %c0_19 = arith.constant 0 : index
    %c0_20 = arith.constant 0 : index
    %21 = vector.load %arg9[%c0_19, %c0_20] : memref<8x128xf32, #tpu.memory_space<vmem>>, vector<8x128xf32>
    tpu.vector_store %arg9[%c0_19, %c0_20], %20 {strides = array<i32>} : memref<8x128xf32, #tpu.memory_space<vmem>>, vector<8x128xf32>,
    return
  }
  func.func @transform_0(%arg0: i32) -> (i32, i32) {
    %c0_i32 = arith.constant 0 : i32
    %c0_i32_0 = arith.constant 0 : i32
    return %arg0, %c0_i32 : i32, i32
  }
  func.func @transform_1(%arg0: i32) -> (i32, i32) {
    %c0_i32 = arith.constant 0 : i32
    %c0_i32_0 = arith.constant 0 : i32
    %c0_i32_1 = arith.constant 0 : i32
    return %c0_i32, %c0_i32_0 : i32, i32
  }
  func.func @transform_2(%arg0: i32) -> (i32, i32) {
    %c0_i32 = arith.constant 0 : i32
    %c0_i32_0 = arith.constant 0 : i32
    %c0_i32_1 = arith.constant 0 : i32
    return %c0_i32, %c0_i32_0 : i32, i32
  }
  func.func @transform_3(%arg0: i32) -> (i32, i32) {
    %c0_i32 = arith.constant 0 : i32
    %c0_i32_0 = arith.constant 0 : i32
    %c0_i32_1 = arith.constant 0 : i32
    return %c0_i32, %c0_i32_0 : i32, i32
  }
  func.func @transform_4(%arg0: i32) -> (i32, i32) {
    %c0_i32 = arith.constant 0 : i32
    %c0_i32_0 = arith.constant 0 : i32
    %c0_i32_1 = arith.constant 0 : i32
    return %c0_i32, %c0_i32_0 : i32, i32
  }
  func.func @transform_5(%arg0: i32) -> (i32, i32) {
    %c0_i32 = arith.constant 0 : i32
    %c0_i32_0 = arith.constant 0 : i32
    %c0_i32_1 = arith.constant 0 : i32
    return %c0_i32, %c0_i32_0 : i32, i32
  }
  func.func @transform_6(%arg0: i32) -> (i32, i32) {
    %c0_i32 = arith.constant 0 : i32
    %c0_i32_0 = arith.constant 0 : i32
    %c0_i32_1 = arith.constant 0 : i32
    return %c0_i32, %c0_i32_0 : i32, i32
  }
  func.func @transform_7(%arg0: i32) -> (i32, i32) {
    %c0_i32 = arith.constant 0 : i32
    %c0_i32_0 = arith.constant 0 : i32
    return %arg0, %c0_i32 : i32, i32
  }
  func.func @transform_8(%arg0: i32) -> (i32, i32) {
    %c0_i32 = arith.constant 0 : i32
    %c0_i32_0 = arith.constant 0 : i32
    return %arg0, %c0_i32 : i32, i32
  }
}

</mosaic_0001>

<llo_original>
// kernel: tpu_custom_call.1
$region0: #{tpu_custom_call.1}
  #allocation0 [shape = 'u32[]', space=smem, size = 0x4, offset = 0x4, fixed_abs, tag = 'smem constant byte address 0x4 - core index']
  #allocation1 [shape = 'u32[144,128]{1,0:T(1,128)}', space=vmem, size = 0x12000, scoped, tag = 'internal scratch']
  %s0 = inlined_call_operand.hbm [shape: f32[8,1024], index: 0, kind: input, shape index: {}]
  %s1 = inlined_call_operand.hbm [shape: f32[1024,512], index: 1, kind: input, shape index: {}]
  %s2 = inlined_call_operand.hbm [shape: f32[1,512], index: 2, kind: input, shape index: {}]
  %s3 = inlined_call_operand.hbm [shape: f32[512,256], index: 3, kind: input, shape index: {}]
  %s4 = inlined_call_operand.hbm [shape: f32[1,256], index: 4, kind: input, shape index: {}]
  %s5 = inlined_call_operand.hbm [shape: f32[256,128], index: 5, kind: input, shape index: {}]
  %s6 = inlined_call_operand.hbm [shape: f32[1,128], index: 6, kind: input, shape index: {}]
  %s7 = inlined_call_operand.hbm [shape: f32[8,512], index: 7, kind: output, shape index: {0}]
  %s8 = inlined_call_operand.hbm [shape: f32[8,128], index: 8, kind: output, shape index: {1}]
  %9 = xla_tuple %s7, %s8
  %s10 = sld [smem:[#allocation0]]
  $region74: #{tpu_custom_call.1} parent=0
    _
  %s12 = ssub.s32 1, %s10
  %s13 = scalar_select 0, %s12, %s10
  $region1: #{tpu_custom_call.1} parent=0
    #allocation2 [shape = 'u8[32768]{0}', space=vmem, size = 0x8000, scoped, tag = 'input window, operand 0, single buffered']
    #allocation3 [shape = 's32[1]{0}', space=sflag, size = 0x4, scoped, tag = 'scoped memory for tpu_custom_call.1']
    #allocation4 [shape = 's32[1]{0}', space=sflag, size = 0x4, scoped, tag = 'scoped memory for tpu_custom_call.1']
    #allocation5 [shape = 'u8[2097152]{0}', space=vmem, size = 0x200000, scoped, tag = 'input window, operand 1, single buffered']
    #allocation6 [shape = 's32[1]{0}', space=sflag, size = 0x4, scoped, tag = 'scoped memory for tpu_custom_call.1']
    #allocation7 [shape = 'u8[2048]{0}', space=vmem, size = 0x800, scoped, tag = 'input window, operand 2, single buffered']
    #allocation8 [shape = 'u8[524288]{0}', space=vmem, size = 0x80000, scoped, tag = 'input window, operand 3, single buffered']
    #allocation9 [shape = 's32[1]{0}', space=sflag, size = 0x4, scoped, tag = 'scoped memory for tpu_custom_call.1']
    #allocation10 [shape = 'u8[1024]{0}', space=vmem, size = 0x400, scoped, tag = 'input window, operand 4, single buffered']
    #allocation11 [shape = 'u8[131072]{0}', space=vmem, size = 0x20000, scoped, tag = 'input window, operand 5, single buffered']
    #allocation12 [shape = 's32[1]{0}', space=sflag, size = 0x4, scoped, tag = 'scoped memory for tpu_custom_call.1']
    #allocation13 [shape = 'u8[512]{0}', space=vmem, size = 0x400, scoped, tag = 'input window, operand 6, single buffered']
    #allocation14 [shape = 'u8[16384]{0}', space=vmem, size = 0x4000, scoped, tag = 'output window, operand 0, single buffered']
    #allocation15 [shape = 'u8[4096]{0}', space=vmem, size = 0x1000, scoped, tag = 'output window, operand 1, single buffered']
    #allocation16 [shape = 's32[1]{0}', space=sflag, size = 0x4, scoped, tag = 'scoped memory for tpu_custom_call.1']
    %14 = vsyncpa [#allocation3], 0
    %15 = vsyncpa [#allocation6], 0
    %16 = vsyncpa [#allocation9], 0
    %17 = vsyncpa [#allocation12], 0
    %18 = vsyncpa [#allocation4], 0
    %19 = vsyncpa [#allocation16], 0
    // Predicated region
    $region2: #{tpu_custom_call.1} parent=1 // pred_check
      _
    $region3: #{tpu_custom_call.1} parent=1 // pred_check_branch
      %21 = sbr.rel (0) target = $region5
    $region4: #{tpu_custom_call.1} parent=1 // pred_region
      %s23 = ssub.s32 1024, 1024
      %24 = vsyncadd [#allocation3], %s23
      %s26 = sshll.u32 [#allocation2], 4
      %s27 = int_to_ptr.vmem [resolvable:$true] %s26
      %29 = dma.hbm_to_vmem [thread:$0]  %s0, 1024, %s27, [#allocation3]
    $region5: #{tpu_custom_call.1} parent=1 // pred_fallthru
      _
    // Predicated region
    $region6: #{tpu_custom_call.1} parent=1 // pred_check
      _
    $region7: #{tpu_custom_call.1} parent=1 // pred_check_branch
      %31 = sbr.rel (0) target = $region9
    $region8: #{tpu_custom_call.1} parent=1 // pred_region
      %s33 = ssub.s32 65536, 65536
      %34 = vsyncadd [#allocation6], %s33
      %s35 = sshll.u32 [#allocation5], 4
      %s36 = int_to_ptr.vmem [resolvable:$true] %s35
      %41 = dma.hbm_to_vmem [thread:$0]  %s1, 65536, %s36, [#allocation6], 512, 512, 32
    $region9: #{tpu_custom_call.1} parent=1 // pred_fallthru
      _
    // Predicated region
    $region10: #{tpu_custom_call.1} parent=1 // pred_check
      _
    $region11: #{tpu_custom_call.1} parent=1 // pred_check_branch
      %43 = sbr.rel (0) target = $region13
    $region12: #{tpu_custom_call.1} parent=1 // pred_region
      %s45 = ssub.s32 64, 64
      %46 = vsyncadd [#allocation6], %s45
      %s48 = sshll.u32 [#allocation7], 4
      %s49 = int_to_ptr.vmem [resolvable:$true] %s48
      %51 = dma.hbm_to_vmem [thread:$0]  %s2, 64, %s49, [#allocation6]
    $region13: #{tpu_custom_call.1} parent=1 // pred_fallthru
      _
    // Predicated region
    $region14: #{tpu_custom_call.1} parent=1 // pred_check
      _
    $region15: #{tpu_custom_call.1} parent=1 // pred_check_branch
      %53 = sbr.rel (0) target = $region17
    $region16: #{tpu_custom_call.1} parent=1 // pred_region
      %s55 = ssub.s32 16384, 16384
      %56 = vsyncadd [#allocation9], %s55
      %s57 = sshll.u32 [#allocation8], 4
      %s58 = int_to_ptr.vmem [resolvable:$true] %s57
      %63 = dma.hbm_to_vmem [thread:$0]  %s3, 16384, %s58, [#allocation9], 256, 256, 16
    $region17: #{tpu_custom_call.1} parent=1 // pred_fallthru
      _
    // Predicated region
    $region18: #{tpu_custom_call.1} parent=1 // pred_check
      _
    $region19: #{tpu_custom_call.1} parent=1 // pred_check_branch
      %65 = sbr.rel (0) target = $region21
    $region20: #{tpu_custom_call.1} parent=1 // pred_region
      %s67 = ssub.s32 32, 32
      %68 = vsyncadd [#allocation9], %s67
      %s70 = sshll.u32 [#allocation10], 4
      %s71 = int_to_ptr.vmem [resolvable:$true] %s70
      %73 = dma.hbm_to_vmem [thread:$0]  %s4, 32, %s71, [#allocation9]
    $region21: #{tpu_custom_call.1} parent=1 // pred_fallthru
      _
    // Predicated region
    $region22: #{tpu_custom_call.1} parent=1 // pred_check
      _
    $region23: #{tpu_custom_call.1} parent=1 // pred_check_branch
      %75 = sbr.rel (0) target = $region25
    $region24: #{tpu_custom_call.1} parent=1 // pred_region
      %s77 = ssub.s32 4096, 4096
      %78 = vsyncadd [#allocation12], %s77
      %s79 = sshll.u32 [#allocation11], 4
      %s80 = int_to_ptr.vmem [resolvable:$true] %s79
      %85 = dma.hbm_to_vmem [thread:$0]  %s5, 4096, %s80, [#allocation12], 128, 128, 8
    $region25: #{tpu_custom_call.1} parent=1 // pred_fallthru
      _
    // Predicated region
    $region26: #{tpu_custom_call.1} parent=1 // pred_check
      _
    $region27: #{tpu_custom_call.1} parent=1 // pred_check_branch
      %87 = sbr.rel (0) target = $region29
    $region28: #{tpu_custom_call.1} parent=1 // pred_region
      %s89 = ssub.s32 16, 16
      %90 = vsyncadd [#allocation12], %s89
      %s92 = sshll.u32 [#allocation13], 4
      %s93 = int_to_ptr.vmem [resolvable:$true] %s92
      %95 = dma.hbm_to_vmem [thread:$0]  %s6, 16, %s93, [#allocation12]
    $region29: #{tpu_custom_call.1} parent=1 // pred_fallthru
      _
    // Predicated region
    $region30: #{tpu_custom_call.1} parent=1 // pred_check
      _
    $region31: #{tpu_custom_call.1} parent=1 // pred_check_branch
      %97 = sbr.rel (0) target = $region33
    $region32: #{tpu_custom_call.1} parent=1 // pred_region
      %98 = dma.done [#allocation3], 1024
    $region33: #{tpu_custom_call.1} parent=1 // pred_fallthru
      _
    // Predicated region
    $region34: #{tpu_custom_call.1} parent=1 // pred_check
      _
    $region35: #{tpu_custom_call.1} parent=1 // pred_check_branch
      %100 = sbr.rel (0) target = $region37
    $region36: #{tpu_custom_call.1} parent=1 // pred_region
      %101 = dma.done [#allocation6], 65536
    $region37: #{tpu_custom_call.1} parent=1 // pred_fallthru
      _
    // Predicated region
    $region38: #{tpu_custom_call.1} parent=1 // pred_check
      _
    $region39: #{tpu_custom_call.1} parent=1 // pred_check_branch
      %103 = sbr.rel (0) target = $region41
    $region40: #{tpu_custom_call.1} parent=1 // pred_region
      %104 = dma.done [#allocation6], 64
    $region41: #{tpu_custom_call.1} parent=1 // pred_fallthru
      _
    // Predicated region
    $region42: #{tpu_custom_call.1} parent=1 // pred_check
      _
    $region43: #{tpu_custom_call.1} parent=1 // pred_check_branch
      %106 = sbr.rel (0) target = $region45
    $region44: #{tpu_custom_call.1} parent=1 // pred_region
      %107 = dma.done [#allocation9], 16384
    $region45: #{tpu_custom_call.1} parent=1 // pred_fallthru
      _
    // Predicated region
    $region46: #{tpu_custom_call.1} parent=1 // pred_check
      _
    $region47: #{tpu_custom_call.1} parent=1 // pred_check_branch
      %109 = sbr.rel (0) target = $region49
    $region48: #{tpu_custom_call.1} parent=1 // pred_region
      %110 = dma.done [#allocation9], 32
    $region49: #{tpu_custom_call.1} parent=1 // pred_fallthru
      _
    // Predicated region
    $region50: #{tpu_custom_call.1} parent=1 // pred_check
      _
    $region51: #{tpu_custom_call.1} parent=1 // pred_check_branch
      %112 = sbr.rel (0) target = $region53
    $region52: #{tpu_custom_call.1} parent=1 // pred_region
      %113 = dma.done [#allocation12], 4096
    $region53: #{tpu_custom_call.1} parent=1 // pred_fallthru
      _
    // Predicated region
    $region54: #{tpu_custom_call.1} parent=1 // pred_check
      _
    $region55: #{tpu_custom_call.1} parent=1 // pred_check_branch
      %115 = sbr.rel (0) target = $region57
    $region56: #{tpu_custom_call.1} parent=1 // pred_region
      %116 = dma.done [#allocation12], 16
    $region57: #{tpu_custom_call.1} parent=1 // pred_fallthru
      _
    %v117 = vld [vmem:[#allocation2] sm:$0xff]
    %v118 = vld [vmem:[#allocation2 + $0x8] sm:$0xff]
    %v119 = vld [vmem:[#allocation2 + $0x10] sm:$0xff]
    %v120 = vld [vmem:[#allocation2 + $0x18] sm:$0xff]
    %v121 = vld [vmem:[#allocation2 + $0x20] sm:$0xff]
    %v122 = vld [vmem:[#allocation2 + $0x28] sm:$0xff]
    %v123 = vld [vmem:[#allocation2 + $0x30] sm:$0xff]
    %v124 = vld [vmem:[#allocation2 + $0x38] sm:$0xff]
    %v125 = vld [vmem:[#allocation5] sm:$0xff]
    %v126 = vld [vmem:[#allocation5 + $0x8] sm:$0xff]
    %v127 = vld [vmem:[#allocation5 + $0x10] sm:$0xff]
    %v128 = vld [vmem:[#allocation5 + $0x18] sm:$0xff]
    %v129 = vld [vmem:[#allocation5 + $0x20] sm:$0xff]
    %v130 = vld [vmem:[#allocation5 + $0x28] sm:$0xff]
    %v131 = vld [vmem:[#allocation5 + $0x30] sm:$0xff]
    %v132 = vld [vmem:[#allocation5 + $0x38] sm:$0xff]
    %v133 = vld [vmem:[#allocation5 + $0x40] sm:$0xff]
    %v134 = vld [vmem:[#allocation5 + $0x48] sm:$0xff]
    %v135 = vld [vmem:[#allocation5 + $0x50] sm:$0xff]
    %v136 = vld [vmem:[#allocation5 + $0x58] sm:$0xff]
    %v137 = vld [vmem:[#allocation5 + $0x60] sm:$0xff]
    %v138 = vld [vmem:[#allocation5 + $0x68] sm:$0xff]
    %v139 = vld [vmem:[#allocation5 + $0x70] sm:$0xff]
    %v140 = vld [vmem:[#allocation5 + $0x78] sm:$0xff]
    %v141 = vld [vmem:[#allocation5 + $0x80] sm:$0xff]
    %v142 = vld [vmem:[#allocation5 + $0x88] sm:$0xff]
    %v143 = vld [vmem:[#allocation5 + $0x90] sm:$0xff]
    %v144 = vld [vmem:[#allocation5 + $0x98] sm:$0xff]
    %v145 = vld [vmem:[#allocation5 + $0xa0] sm:$0xff]
    %v146 = vld [vmem:[#allocation5 + $0xa8] sm:$0xff]
    %v147 = vld [vmem:[#allocation5 + $0xb0] sm:$0xff]
    %v148 = vld [vmem:[#allocation5 + $0xb8] sm:$0xff]
    %v149 = vld [vmem:[#allocation5 + $0xc0] sm:$0xff]
    %v150 = vld [vmem:[#allocation5 + $0xc8] sm:$0xff]
    %v151 = vld [vmem:[#allocation5 + $0xd0] sm:$0xff]
    %v152 = vld [vmem:[#allocation5 + $0xd8] sm:$0xff]
    %v153 = vld [vmem:[#allocation5 + $0xe0] sm:$0xff]
    %v154 = vld [vmem:[#allocation5 + $0xe8] sm:$0xff]
    %v155 = vld [vmem:[#allocation5 + $0xf0] sm:$0xff]
    %v156 = vld [vmem:[#allocation5 + $0xf8] sm:$0xff]
    %v157 = vld [vmem:[#allocation5 + $0x100] sm:$0xff]
    %v158 = vld [vmem:[#allocation5 + $0x108] sm:$0xff]
    %v159 = vld [vmem:[#allocation5 + $0x110] sm:$0xff]
    %v160 = vld [vmem:[#allocation5 + $0x118] sm:$0xff]
    %v161 = vld [vmem:[#allocation5 + $0x120] sm:$0xff]
    %v162 = vld [vmem:[#allocation5 + $0x128] sm:$0xff]
    %v163 = vld [vmem:[#allocation5 + $0x130] sm:$0xff]
    %v164 = vld [vmem:[#allocation5 + $0x138] sm:$0xff]
    %v165 = vld [vmem:[#allocation5 + $0x140] sm:$0xff]
    %v166 = vld [vmem:[#allocation5 + $0x148] sm:$0xff]
    %v167 = vld [vmem:[#allocation5 + $0x150] sm:$0xff]
    %v168 = vld [vmem:[#allocation5 + $0x158] sm:$0xff]
    %v169 = vld [vmem:[#allocation5 + $0x160] sm:$0xff]
    %v170 = vld [vmem:[#allocation5 + $0x168] sm:$0xff]
    %v171 = vld [vmem:[#allocation5 + $0x170] sm:$0xff]
    %v172 = vld [vmem:[#allocation5 + $0x178] sm:$0xff]
    %v173 = vld [vmem:[#allocation5 + $0x180] sm:$0xff]
    %v174 = vld [vmem:[#allocation5 + $0x188] sm:$0xff]
    %v175 = vld [vmem:[#allocation5 + $0x190] sm:$0xff]
    %v176 = vld [vmem:[#allocation5 + $0x198] sm:$0xff]
    %v177 = vld [vmem:[#allocation5 + $0x1a0] sm:$0xff]
    %v178 = vld [vmem:[#allocation5 + $0x1a8] sm:$0xff]
    %v179 = vld [vmem:[#allocation5 + $0x1b0] sm:$0xff]
    %v180 = vld [vmem:[#allocation5 + $0x1b8] sm:$0xff]
    %v181 = vld [vmem:[#allocation5 + $0x1c0] sm:$0xff]
    %v182 = vld [vmem:[#allocation5 + $0x1c8] sm:$0xff]
    %v183 = vld [vmem:[#allocation5 + $0x1d0] sm:$0xff]
    %v184 = vld [vmem:[#allocation5 + $0x1d8] sm:$0xff]
    %v185 = vld [vmem:[#allocation5 + $0x1e0] sm:$0xff]
    %v186 = vld [vmem:[#allocation5 + $0x1e8] sm:$0xff]
    %v187 = vld [vmem:[#allocation5 + $0x1f0] sm:$0xff]
    %v188 = vld [vmem:[#allocation5 + $0x1f8] sm:$0xff]
    %v189 = vld [vmem:[#allocation5 + $0x200] sm:$0xff]
    %v190 = vld [vmem:[#allocation5 + $0x208] sm:$0xff]
    %v191 = vld [vmem:[#allocation5 + $0x210] sm:$0xff]
    %v192 = vld [vmem:[#allocation5 + $0x218] sm:$0xff]
    %v193 = vld [vmem:[#allocation5 + $0x220] sm:$0xff]
    %v194 = vld [vmem:[#allocation5 + $0x228] sm:$0xff]
    %v195 = vld [vmem:[#allocation5 + $0x230] sm:$0xff]
    %v196 = vld [vmem:[#allocation5 + $0x238] sm:$0xff]
    %v197 = vld [vmem:[#allocation5 + $0x240] sm:$0xff]
    %v198 = vld [vmem:[#allocation5 + $0x248] sm:$0xff]
    %v199 = vld [vmem:[#allocation5 + $0x250] sm:$0xff]
    %v200 = vld [vmem:[#allocation5 + $0x258] sm:$0xff]
    %v201 = vld [vmem:[#allocation5 + $0x260] sm:$0xff]
    %v202 = vld [vmem:[#allocation5 + $0x268] sm:$0xff]
    %v203 = vld [vmem:[#allocation5 + $0x270] sm:$0xff]
    %v204 = vld [vmem:[#allocation5 + $0x278] sm:$0xff]
    %v205 = vld [vmem:[#allocation5 + $0x280] sm:$0xff]
    %v206 = vld [vmem:[#allocation5 + $0x288] sm:$0xff]
    %v207 = vld [vmem:[#allocation5 + $0x290] sm:$0xff]
    %v208 = vld [vmem:[#allocation5 + $0x298] sm:$0xff]
    %v209 = vld [vmem:[#allocation5 + $0x2a0] sm:$0xff]
    %v210 = vld [vmem:[#allocation5 + $0x2a8] sm:$0xff]
    %v211 = vld [vmem:[#allocation5 + $0x2b0] sm:$0xff]
    %v212 = vld [vmem:[#allocation5 + $0x2b8] sm:$0xff]
    %v213 = vld [vmem:[#allocation5 + $0x2c0] sm:$0xff]
    %v214 = vld [vmem:[#allocation5 + $0x2c8] sm:$0xff]
    %v215 = vld [vmem:[#allocation5 + $0x2d0] sm:$0xff]
    %v216 = vld [vmem:[#allocation5 + $0x2d8] sm:$0xff]
    %v217 = vld [vmem:[#allocation5 + $0x2e0] sm:$0xff]
    %v218 = vld [vmem:[#allocation5 + $0x2e8] sm:$0xff]
    %v219 = vld [vmem:[#allocation5 + $0x2f0] sm:$0xff]
    %v220 = vld [vmem:[#allocation5 + $0x2f8] sm:$0xff]
    %v221 = vld [vmem:[#allocation5 + $0x300] sm:$0xff]
    %v222 = vld [vmem:[#allocation5 + $0x308] sm:$0xff]
    %v223 = vld [vmem:[#allocation5 + $0x310] sm:$0xff]
    %v224 = vld [vmem:[#allocation5 + $0x318] sm:$0xff]
    %v225 = vld [vmem:[#allocation5 + $0x320] sm:$0xff]
    %v226 = vld [vmem:[#allocation5 + $0x328] sm:$0xff]
    %v227 = vld [vmem:[#allocation5 + $0x330] sm:$0xff]
    %v228 = vld [vmem:[#allocation5 + $0x338] sm:$0xff]
    %v229 = vld [vmem:[#allocation5 + $0x340] sm:$0xff]
    %v230 = vld [vmem:[#allocation5 + $0x348] sm:$0xff]
    %v231 = vld [vmem:[#allocation5 + $0x350] sm:$0xff]
    %v232 = vld [vmem:[#allocation5 + $0x358] sm:$0xff]
    %v233 = vld [vmem:[#allocation5 + $0x360] sm:$0xff]
    %v234 = vld [vmem:[#allocation5 + $0x368] sm:$0xff]
    %v235 = vld [vmem:[#allocation5 + $0x370] sm:$0xff]
    %v236 = vld [vmem:[#allocation5 + $0x378] sm:$0xff]
    %v237 = vld [vmem:[#allocation5 + $0x380] sm:$0xff]
    %v238 = vld [vmem:[#allocation5 + $0x388] sm:$0xff]
    %v239 = vld [vmem:[#allocation5 + $0x390] sm:$0xff]
    %v240 = vld [vmem:[#allocation5 + $0x398] sm:$0xff]
    %v241 = vld [vmem:[#allocation5 + $0x3a0] sm:$0xff]
    %v242 = vld [vmem:[#allocation5 + $0x3a8] sm:$0xff]
    %v243 = vld [vmem:[#allocation5 + $0x3b0] sm:$0xff]
    %v244 = vld [vmem:[#allocation5 + $0x3b8] sm:$0xff]
    %v245 = vld [vmem:[#allocation5 + $0x3c0] sm:$0xff]
    %v246 = vld [vmem:[#allocation5 + $0x3c8] sm:$0xff]
    %v247 = vld [vmem:[#allocation5 + $0x3d0] sm:$0xff]
    %v248 = vld [vmem:[#allocation5 + $0x3d8] sm:$0xff]
    %v249 = vld [vmem:[#allocation5 + $0x3e0] sm:$0xff]
    %v250 = vld [vmem:[#allocation5 + $0x3e8] sm:$0xff]
    %v251 = vld [vmem:[#allocation5 + $0x3f0] sm:$0xff]
    %v252 = vld [vmem:[#allocation5 + $0x3f8] sm:$0xff]
    %v253 = vld [vmem:[#allocation5 + $0x400] sm:$0xff]
    %v254 = vld [vmem:[#allocation5 + $0x408] sm:$0xff]
    %v255 = vld [vmem:[#allocation5 + $0x410] sm:$0xff]
    %v256 = vld [vmem:[#allocation5 + $0x418] sm:$0xff]
    %v257 = vld [vmem:[#allocation5 + $0x420] sm:$0xff]
    %v258 = vld [vmem:[#allocation5 + $0x428] sm:$0xff]
    %v259 = vld [vmem:[#allocation5 + $0x430] sm:$0xff]
    %v260 = vld [vmem:[#allocation5 + $0x438] sm:$0xff]
    %v261 = vld [vmem:[#allocation5 + $0x440] sm:$0xff]
    %v262 = vld [vmem:[#allocation5 + $0x448] sm:$0xff]
    %v263 = vld [vmem:[#allocation5 + $0x450] sm:$0xff]
    %v264 = vld [vmem:[#allocation5 + $0x458] sm:$0xff]
    %v265 = vld [vmem:[#allocation5 + $0x460] sm:$0xff]
    %v266 = vld [vmem:[#allocation5 + $0x468] sm:$0xff]
    %v267 = vld [vmem:[#allocation5 + $0x470] sm:$0xff]
    %v268 = vld [vmem:[#allocation5 + $0x478] sm:$0xff]
    %v269 = vld [vmem:[#allocation5 + $0x480] sm:$0xff]
    %v270 = vld [vmem:[#allocation5 + $0x488] sm:$0xff]
    %v271 = vld [vmem:[#allocation5 + $0x490] sm:$0xff]
    %v272 = vld [vmem:[#allocation5 + $0x498] sm:$0xff]
    %v273 = vld [vmem:[#allocation5 + $0x4a0] sm:$0xff]
    %v274 = vld [vmem:[#allocation5 + $0x4a8] sm:$0xff]
    %v275 = vld [vmem:[#allocation5 + $0x4b0] sm:$0xff]
    %v276 = vld [vmem:[#allocation5 + $0x4b8] sm:$0xff]
    %v277 = vld [vmem:[#allocation5 + $0x4c0] sm:$0xff]
    %v278 = vld [vmem:[#allocation5 + $0x4c8] sm:$0xff]
    %v279 = vld [vmem:[#allocation5 + $0x4d0] sm:$0xff]
    %v280 = vld [vmem:[#allocation5 + $0x4d8] sm:$0xff]
    %v281 = vld [vmem:[#allocation5 + $0x4e0] sm:$0xff]
    %v282 = vld [vmem:[#allocation5 + $0x4e8] sm:$0xff]
    %v283 = vld [vmem:[#allocation5 + $0x4f0] sm:$0xff]
    %v284 = vld [vmem:[#allocation5 + $0x4f8] sm:$0xff]
    %v285 = vld [vmem:[#allocation5 + $0x500] sm:$0xff]
    %v286 = vld [vmem:[#allocation5 + $0x508] sm:$0xff]
    %v287 = vld [vmem:[#allocation5 + $0x510] sm:$0xff]
    %v288 = vld [vmem:[#allocation5 + $0x518] sm:$0xff]
    %v289 = vld [vmem:[#allocation5 + $0x520] sm:$0xff]
    %v290 = vld [vmem:[#allocation5 + $0x528] sm:$0xff]
    %v291 = vld [vmem:[#allocation5 + $0x530] sm:$0xff]
    %v292 = vld [vmem:[#allocation5 + $0x538] sm:$0xff]
    %v293 = vld [vmem:[#allocation5 + $0x540] sm:$0xff]
    %v294 = vld [vmem:[#allocation5 + $0x548] sm:$0xff]
    %v295 = vld [vmem:[#allocation5 + $0x550] sm:$0xff]
    %v296 = vld [vmem:[#allocation5 + $0x558] sm:$0xff]
    %v297 = vld [vmem:[#allocation5 + $0x560] sm:$0xff]
    %v298 = vld [vmem:[#allocation5 + $0x568] sm:$0xff]
    %v299 = vld [vmem:[#allocation5 + $0x570] sm:$0xff]
    %v300 = vld [vmem:[#allocation5 + $0x578] sm:$0xff]
    %v301 = vld [vmem:[#allocation5 + $0x580] sm:$0xff]
    %v302 = vld [vmem:[#allocation5 + $0x588] sm:$0xff]
    %v303 = vld [vmem:[#allocation5 + $0x590] sm:$0xff]
    %v304 = vld [vmem:[#allocation5 + $0x598] sm:$0xff]
    %v305 = vld [vmem:[#allocation5 + $0x5a0] sm:$0xff]
    %v306 = vld [vmem:[#allocation5 + $0x5a8] sm:$0xff]
    %v307 = vld [vmem:[#allocation5 + $0x5b0] sm:$0xff]
    %v308 = vld [vmem:[#allocation5 + $0x5b8] sm:$0xff]
    %v309 = vld [vmem:[#allocation5 + $0x5c0] sm:$0xff]
    %v310 = vld [vmem:[#allocation5 + $0x5c8] sm:$0xff]
    %v311 = vld [vmem:[#allocation5 + $0x5d0] sm:$0xff]
    %v312 = vld [vmem:[#allocation5 + $0x5d8] sm:$0xff]
    %v313 = vld [vmem:[#allocation5 + $0x5e0] sm:$0xff]
    %v314 = vld [vmem:[#allocation5 + $0x5e8] sm:$0xff]
    %v315 = vld [vmem:[#allocation5 + $0x5f0] sm:$0xff]
    %v316 = vld [vmem:[#allocation5 + $0x5f8] sm:$0xff]
    %v317 = vld [vmem:[#allocation5 + $0x600] sm:$0xff]
    %v318 = vld [vmem:[#allocation5 + $0x608] sm:$0xff]
    %v319 = vld [vmem:[#allocation5 + $0x610] sm:$0xff]
    %v320 = vld [vmem:[#allocation5 + $0x618] sm:$0xff]
    %v321 = vld [vmem:[#allocation5 + $0x620] sm:$0xff]
    %v322 = vld [vmem:[#allocation5 + $0x628] sm:$0xff]
    %v323 = vld [vmem:[#allocation5 + $0x630] sm:$0xff]
    %v324 = vld [vmem:[#allocation5 + $0x638] sm:$0xff]
    %v325 = vld [vmem:[#allocation5 + $0x640] sm:$0xff]
    %v326 = vld [vmem:[#allocation5 + $0x648] sm:$0xff]
    %v327 = vld [vmem:[#allocation5 + $0x650] sm:$0xff]
    %v328 = vld [vmem:[#allocation5 + $0x658] sm:$0xff]
    %v329 = vld [vmem:[#allocation5 + $0x660] sm:$0xff]
    %v330 = vld [vmem:[#allocation5 + $0x668] sm:$0xff]
    %v331 = vld [vmem:[#allocation5 + $0x670] sm:$0xff]
    %v332 = vld [vmem:[#allocation5 + $0x678] sm:$0xff]
    %v333 = vld [vmem:[#allocation5 + $0x680] sm:$0xff]
    %v334 = vld [vmem:[#allocation5 + $0x688] sm:$0xff]
    %v335 = vld [vmem:[#allocation5 + $0x690] sm:$0xff]
    %v336 = vld [vmem:[#allocation5 + $0x698] sm:$0xff]
    %v337 = vld [vmem:[#allocation5 + $0x6a0] sm:$0xff]
    %v338 = vld [vmem:[#allocation5 + $0x6a8] sm:$0xff]
    %v339 = vld [vmem:[#allocation5 + $0x6b0] sm:$0xff]
    %v340 = vld [vmem:[#allocation5 + $0x6b8] sm:$0xff]
    %v341 = vld [vmem:[#allocation5 + $0x6c0] sm:$0xff]
    %v342 = vld [vmem:[#allocation5 + $0x6c8] sm:$0xff]
    %v343 = vld [vmem:[#allocation5 + $0x6d0] sm:$0xff]
    %v344 = vld [vmem:[#allocation5 + $0x6d8] sm:$0xff]
    %v345 = vld [vmem:[#allocation5 + $0x6e0] sm:$0xff]
    %v346 = vld [vmem:[#allocation5 + $0x6e8] sm:$0xff]
    %v347 = vld [vmem:[#allocation5 + $0x6f0] sm:$0xff]
    %v348 = vld [vmem:[#allocation5 + $0x6f8] sm:$0xff]
    %v349 = vld [vmem:[#allocation5 + $0x700] sm:$0xff]
    %v350 = vld [vmem:[#allocation5 + $0x708] sm:$0xff]
    %v351 = vld [vmem:[#allocation5 + $0x710] sm:$0xff]
    %v352 = vld [vmem:[#allocation5 + $0x718] sm:$0xff]
    %v353 = vld [vmem:[#allocation5 + $0x720] sm:$0xff]
    %v354 = vld [vmem:[#allocation5 + $0x728] sm:$0xff]
    %v355 = vld [vmem:[#allocation5 + $0x730] sm:$0xff]
    %v356 = vld [vmem:[#allocation5 + $0x738] sm:$0xff]
    %v357 = vld [vmem:[#allocation5 + $0x740] sm:$0xff]
    %v358 = vld [vmem:[#allocation5 + $0x748] sm:$0xff]
    %v359 = vld [vmem:[#allocation5 + $0x750] sm:$0xff]
    %v360 = vld [vmem:[#allocation5 + $0x758] sm:$0xff]
    %v361 = vld [vmem:[#allocation5 + $0x760] sm:$0xff]
    %v362 = vld [vmem:[#allocation5 + $0x768] sm:$0xff]
    %v363 = vld [vmem:[#allocation5 + $0x770] sm:$0xff]
    %v364 = vld [vmem:[#allocation5 + $0x778] sm:$0xff]
    %v365 = vld [vmem:[#allocation5 + $0x780] sm:$0xff]
    %v366 = vld [vmem:[#allocation5 + $0x788] sm:$0xff]
    %v367 = vld [vmem:[#allocation5 + $0x790] sm:$0xff]
    %v368 = vld [vmem:[#allocation5 + $0x798] sm:$0xff]
    %v369 = vld [vmem:[#allocation5 + $0x7a0] sm:$0xff]
    %v370 = vld [vmem:[#allocation5 + $0x7a8] sm:$0xff]
    %v371 = vld [vmem:[#allocation5 + $0x7b0] sm:$0xff]
    %v372 = vld [vmem:[#allocation5 + $0x7b8] sm:$0xff]
    %v373 = vld [vmem:[#allocation5 + $0x7c0] sm:$0xff]
    %v374 = vld [vmem:[#allocation5 + $0x7c8] sm:$0xff]
    %v375 = vld [vmem:[#allocation5 + $0x7d0] sm:$0xff]
    %v376 = vld [vmem:[#allocation5 + $0x7d8] sm:$0xff]
    %v377 = vld [vmem:[#allocation5 + $0x7e0] sm:$0xff]
    %v378 = vld [vmem:[#allocation5 + $0x7e8] sm:$0xff]
    %v379 = vld [vmem:[#allocation5 + $0x7f0] sm:$0xff]
    %v380 = vld [vmem:[#allocation5 + $0x7f8] sm:$0xff]
    %v381 = vld [vmem:[#allocation5 + $0x800] sm:$0xff]
    %v382 = vld [vmem:[#allocation5 + $0x808] sm:$0xff]
    %v383 = vld [vmem:[#allocation5 + $0x810] sm:$0xff]
    %v384 = vld [vmem:[#allocation5 + $0x818] sm:$0xff]
    %v385 = vld [vmem:[#allocation5 + $0x820] sm:$0xff]
    %v386 = vld [vmem:[#allocation5 + $0x828] sm:$0xff]
    %v387 = vld [vmem:[#allocation5 + $0x830] sm:$0xff]
    %v388 = vld [vmem:[#allocation5 + $0x838] sm:$0xff]
    %v389 = vld [vmem:[#allocation5 + $0x840] sm:$0xff]
    %v390 = vld [vmem:[#allocation5 + $0x848] sm:$0xff]
    %v391 = vld [vmem:[#allocation5 + $0x850] sm:$0xff]
    %v392 = vld [vmem:[#allocation5 + $0x858] sm:$0xff]
    %v393 = vld [vmem:[#allocation5 + $0x860] sm:$0xff]
    %v394 = vld [vmem:[#allocation5 + $0x868] sm:$0xff]
    %v395 = vld [vmem:[#allocation5 + $0x870] sm:$0xff]
    %v396 = vld [vmem:[#allocation5 + $0x878] sm:$0xff]
    %v397 = vld [vmem:[#allocation5 + $0x880] sm:$0xff]
    %v398 = vld [vmem:[#allocation5 + $0x888] sm:$0xff]
    %v399 = vld [vmem:[#allocation5 + $0x890] sm:$0xff]
    %v400 = vld [vmem:[#allocation5 + $0x898] sm:$0xff]
    %v401 = vld [vmem:[#allocation5 + $0x8a0] sm:$0xff]
    %v402 = vld [vmem:[#allocation5 + $0x8a8] sm:$0xff]
    %v403 = vld [vmem:[#allocation5 + $0x8b0] sm:$0xff]
    %v404 = vld [vmem:[#allocation5 + $0x8b8] sm:$0xff]
    %v405 = vld [vmem:[#allocation5 + $0x8c0] sm:$0xff]
    %v406 = vld [vmem:[#allocation5 + $0x8c8] sm:$0xff]
    %v407 = vld [vmem:[#allocation5 + $0x8d0] sm:$0xff]
    %v408 = vld [vmem:[#allocation5 + $0x8d8] sm:$0xff]
    %v409 = vld [vmem:[#allocation5 + $0x8e0] sm:$0xff]
    %v410 = vld [vmem:[#allocation5 + $0x8e8] sm:$0xff]
    %v411 = vld [vmem:[#allocation5 + $0x8f0] sm:$0xff]
    %v412 = vld [vmem:[#allocation5 + $0x8f8] sm:$0xff]
    %v413 = vld [vmem:[#allocation5 + $0x900] sm:$0xff]
    %v414 = vld [vmem:[#allocation5 + $0x908] sm:$0xff]
    %v415 = vld [vmem:[#allocation5 + $0x910] sm:$0xff]
    %v416 = vld [vmem:[#allocation5 + $0x918] sm:$0xff]
    %v417 = vld [vmem:[#allocation5 + $0x920] sm:$0xff]
    %v418 = vld [vmem:[#allocation5 + $0x928] sm:$0xff]
    %v419 = vld [vmem:[#allocation5 + $0x930] sm:$0xff]
    %v420 = vld [vmem:[#allocation5 + $0x938] sm:$0xff]
    %v421 = vld [vmem:[#allocation5 + $0x940] sm:$0xff]
    %v422 = vld [vmem:[#allocation5 + $0x948] sm:$0xff]
    %v423 = vld [vmem:[#allocation5 + $0x950] sm:$0xff]
    %v424 = vld [vmem:[#allocation5 + $0x958] sm:$0xff]
    %v425 = vld [vmem:[#allocation5 + $0x960] sm:$0xff]
    %v426 = vld [vmem:[#allocation5 + $0x968] sm:$0xff]
    %v427 = vld [vmem:[#allocation5 + $0x970] sm:$0xff]
    %v428 = vld [vmem:[#allocation5 + $0x978] sm:$0xff]
    %v429 = vld [vmem:[#allocation5 + $0x980] sm:$0xff]
    %v430 = vld [vmem:[#allocation5 + $0x988] sm:$0xff]
    %v431 = vld [vmem:[#allocation5 + $0x990] sm:$0xff]
    %v432 = vld [vmem:[#allocation5 + $0x998] sm:$0xff]
    %v433 = vld [vmem:[#allocation5 + $0x9a0] sm:$0xff]
    %v434 = vld [vmem:[#allocation5 + $0x9a8] sm:$0xff]
    %v435 = vld [vmem:[#allocation5 + $0x9b0] sm:$0xff]
    %v436 = vld [vmem:[#allocation5 + $0x9b8] sm:$0xff]
    %v437 = vld [vmem:[#allocation5 + $0x9c0] sm:$0xff]
    %v438 = vld [vmem:[#allocation5 + $0x9c8] sm:$0xff]
    %v439 = vld [vmem:[#allocation5 + $0x9d0] sm:$0xff]
    %v440 = vld [vmem:[#allocation5 + $0x9d8] sm:$0xff]
    %v441 = vld [vmem:[#allocation5 + $0x9e0] sm:$0xff]
    %v442 = vld [vmem:[#allocation5 + $0x9e8] sm:$0xff]
    %v443 = vld [vmem:[#allocation5 + $0x9f0] sm:$0xff]
    %v444 = vld [vmem:[#allocation5 + $0x9f8] sm:$0xff]
    %v445 = vld [vmem:[#allocation5 + $0xa00] sm:$0xff]
    %v446 = vld [vmem:[#allocation5 + $0xa08] sm:$0xff]
    %v447 = vld [vmem:[#allocation5 + $0xa10] sm:$0xff]
    %v448 = vld [vmem:[#allocation5 + $0xa18] sm:$0xff]
    %v449 = vld [vmem:[#allocation5 + $0xa20] sm:$0xff]
    %v450 = vld [vmem:[#allocation5 + $0xa28] sm:$0xff]
    %v451 = vld [vmem:[#allocation5 + $0xa30] sm:$0xff]
    %v452 = vld [vmem:[#allocation5 + $0xa38] sm:$0xff]
    %v453 = vld [vmem:[#allocation5 + $0xa40] sm:$0xff]
    %v454 = vld [vmem:[#allocation5 + $0xa48] sm:$0xff]
    %v455 = vld [vmem:[#allocation5 + $0xa50] sm:$0xff]
    %v456 = vld [vmem:[#allocation5 + $0xa58] sm:$0xff]
    %v457 = vld [vmem:[#allocation5 + $0xa60] sm:$0xff]
    %v458 = vld [vmem:[#allocation5 + $0xa68] sm:$0xff]
    %v459 = vld [vmem:[#allocation5 + $0xa70] sm:$0xff]
    %v460 = vld [vmem:[#allocation5 + $0xa78] sm:$0xff]
    %v461 = vld [vmem:[#allocation5 + $0xa80] sm:$0xff]
    %v462 = vld [vmem:[#allocation5 + $0xa88] sm:$0xff]
    %v463 = vld [vmem:[#allocation5 + $0xa90] sm:$0xff]
    %v464 = vld [vmem:[#allocation5 + $0xa98] sm:$0xff]
    %v465 = vld [vmem:[#allocation5 + $0xaa0] sm:$0xff]
    %v466 = vld [vmem:[#allocation5 + $0xaa8] sm:$0xff]
    %v467 = vld [vmem:[#allocation5 + $0xab0] sm:$0xff]
    %v468 = vld [vmem:[#allocation5 + $0xab8] sm:$0xff]
    %v469 = vld [vmem:[#allocation5 + $0xac0] sm:$0xff]
    %v470 = vld [vmem:[#allocation5 + $0xac8] sm:$0xff]
    %v471 = vld [vmem:[#allocation5 + $0xad0] sm:$0xff]
    %v472 = vld [vmem:[#allocation5 + $0xad8] sm:$0xff]
    %v473 = vld [vmem:[#allocation5 + $0xae0] sm:$0xff]
    %v474 = vld [vmem:[#allocation5 + $0xae8] sm:$0xff]
    %v475 = vld [vmem:[#allocation5 + $0xaf0] sm:$0xff]
    %v476 = vld [vmem:[#allocation5 + $0xaf8] sm:$0xff]
    %v477 = vld [vmem:[#allocation5 + $0xb00] sm:$0xff]
    %v478 = vld [vmem:[#allocation5 + $0xb08] sm:$0xff]
    %v479 = vld [vmem:[#allocation5 + $0xb10] sm:$0xff]
    %v480 = vld [vmem:[#allocation5 + $0xb18] sm:$0xff]
    %v481 = vld [vmem:[#allocation5 + $0xb20] sm:$0xff]
    %v482 = vld [vmem:[#allocation5 + $0xb28] sm:$0xff]
    %v483 = vld [vmem:[#allocation5 + $0xb30] sm:$0xff]
    %v484 = vld [vmem:[#allocation5 + $0xb38] sm:$0xff]
    %v485 = vld [vmem:[#allocation5 + $0xb40] sm:$0xff]
    %v486 = vld [vmem:[#allocation5 + $0xb48] sm:$0xff]
    %v487 = vld [vmem:[#allocation5 + $0xb50] sm:$0xff]
    %v488 = vld [vmem:[#allocation5 + $0xb58] sm:$0xff]
    %v489 = vld [vmem:[#allocation5 + $0xb60] sm:$0xff]
    %v490 = vld [vmem:[#allocation5 + $0xb68] sm:$0xff]
    %v491 = vld [vmem:[#allocation5 + $0xb70] sm:$0xff]
    %v492 = vld [vmem:[#allocation5 + $0xb78] sm:$0xff]
    %v493 = vld [vmem:[#allocation5 + $0xb80] sm:$0xff]
    %v494 = vld [vmem:[#allocation5 + $0xb88] sm:$0xff]
    %v495 = vld [vmem:[#allocation5 + $0xb90] sm:$0xff]
    %v496 = vld [vmem:[#allocation5 + $0xb98] sm:$0xff]
    %v497 = vld [vmem:[#allocation5 + $0xba0] sm:$0xff]
    %v498 = vld [vmem:[#allocation5 + $0xba8] sm:$0xff]
    %v499 = vld [vmem:[#allocation5 + $0xbb0] sm:$0xff]
    %v500 = vld [vmem:[#allocation5 + $0xbb8] sm:$0xff]
    %v501 = vld [vmem:[#allocation5 + $0xbc0] sm:$0xff]
    %v502 = vld [vmem:[#allocation5 + $0xbc8] sm:$0xff]
    %v503 = vld [vmem:[#allocation5 + $0xbd0] sm:$0xff]
    %v504 = vld [vmem:[#allocation5 + $0xbd8] sm:$0xff]
    %v505 = vld [vmem:[#allocation5 + $0xbe0] sm:$0xff]
    %v506 = vld [vmem:[#allocation5 + $0xbe8] sm:$0xff]
    %v507 = vld [vmem:[#allocation5 + $0xbf0] sm:$0xff]
    %v508 = vld [vmem:[#allocation5 + $0xbf8] sm:$0xff]
    %v509 = vld [vmem:[#allocation5 + $0xc00] sm:$0xff]
    %v510 = vld [vmem:[#allocation5 + $0xc08] sm:$0xff]
    %v511 = vld [vmem:[#allocation5 + $0xc10] sm:$0xff]
    %v512 = vld [vmem:[#allocation5 + $0xc18] sm:$0xff]
    %v513 = vld [vmem:[#allocation5 + $0xc20] sm:$0xff]
    %v514 = vld [vmem:[#allocation5 + $0xc28] sm:$0xff]
    %v515 = vld [vmem:[#allocation5 + $0xc30] sm:$0xff]
    %v516 = vld [vmem:[#allocation5 + $0xc38] sm:$0xff]
    %v517 = vld [vmem:[#allocation5 + $0xc40] sm:$0xff]
    %v518 = vld [vmem:[#allocation5 + $0xc48] sm:$0xff]
    %v519 = vld [vmem:[#allocation5 + $0xc50] sm:$0xff]
    %v520 = vld [vmem:[#allocation5 + $0xc58] sm:$0xff]
    %v521 = vld [vmem:[#allocation5 + $0xc60] sm:$0xff]
    %v522 = vld [vmem:[#allocation5 + $0xc68] sm:$0xff]
    %v523 = vld [vmem:[#allocation5 + $0xc70] sm:$0xff]
    %v524 = vld [vmem:[#allocation5 + $0xc78] sm:$0xff]
    %v525 = vld [vmem:[#allocation5 + $0xc80] sm:$0xff]
    %v526 = vld [vmem:[#allocation5 + $0xc88] sm:$0xff]
    %v527 = vld [vmem:[#allocation5 + $0xc90] sm:$0xff]
    %v528 = vld [vmem:[#allocation5 + $0xc98] sm:$0xff]
    %v529 = vld [vmem:[#allocation5 + $0xca0] sm:$0xff]
    %v530 = vld [vmem:[#allocation5 + $0xca8] sm:$0xff]
    %v531 = vld [vmem:[#allocation5 + $0xcb0] sm:$0xff]
    %v532 = vld [vmem:[#allocation5 + $0xcb8] sm:$0xff]
    %v533 = vld [vmem:[#allocation5 + $0xcc0] sm:$0xff]
    %v534 = vld [vmem:[#allocation5 + $0xcc8] sm:$0xff]
    %v535 = vld [vmem:[#allocation5 + $0xcd0] sm:$0xff]
    %v536 = vld [vmem:[#allocation5 + $0xcd8] sm:$0xff]
    %v537 = vld [vmem:[#allocation5 + $0xce0] sm:$0xff]
    %v538 = vld [vmem:[#allocation5 + $0xce8] sm:$0xff]
    %v539 = vld [vmem:[#allocation5 + $0xcf0] sm:$0xff]
    %v540 = vld [vmem:[#allocation5 + $0xcf8] sm:$0xff]
    %v541 = vld [vmem:[#allocation5 + $0xd00] sm:$0xff]
    %v542 = vld [vmem:[#allocation5 + $0xd08] sm:$0xff]
    %v543 = vld [vmem:[#allocation5 + $0xd10] sm:$0xff]
    %v544 = vld [vmem:[#allocation5 + $0xd18] sm:$0xff]
    %v545 = vld [vmem:[#allocation5 + $0xd20] sm:$0xff]
    %v546 = vld [vmem:[#allocation5 + $0xd28] sm:$0xff]
    %v547 = vld [vmem:[#allocation5 + $0xd30] sm:$0xff]
    %v548 = vld [vmem:[#allocation5 + $0xd38] sm:$0xff]
    %v549 = vld [vmem:[#allocation5 + $0xd40] sm:$0xff]
    %v550 = vld [vmem:[#allocation5 + $0xd48] sm:$0xff]
    %v551 = vld [vmem:[#allocation5 + $0xd50] sm:$0xff]
    %v552 = vld [vmem:[#allocation5 + $0xd58] sm:$0xff]
    %v553 = vld [vmem:[#allocation5 + $0xd60] sm:$0xff]
    %v554 = vld [vmem:[#allocation5 + $0xd68] sm:$0xff]
    %v555 = vld [vmem:[#allocation5 + $0xd70] sm:$0xff]
    %v556 = vld [vmem:[#allocation5 + $0xd78] sm:$0xff]
    %v557 = vld [vmem:[#allocation5 + $0xd80] sm:$0xff]
    %v558 = vld [vmem:[#allocation5 + $0xd88] sm:$0xff]
    %v559 = vld [vmem:[#allocation5 + $0xd90] sm:$0xff]
    %v560 = vld [vmem:[#allocation5 + $0xd98] sm:$0xff]
    %v561 = vld [vmem:[#allocation5 + $0xda0] sm:$0xff]
    %v562 = vld [vmem:[#allocation5 + $0xda8] sm:$0xff]
    %v563 = vld [vmem:[#allocation5 + $0xdb0] sm:$0xff]
    %v564 = vld [vmem:[#allocation5 + $0xdb8] sm:$0xff]
    %v565 = vld [vmem:[#allocation5 + $0xdc0] sm:$0xff]
    %v566 = vld [vmem:[#allocation5 + $0xdc8] sm:$0xff]
    %v567 = vld [vmem:[#allocation5 + $0xdd0] sm:$0xff]
    %v568 = vld [vmem:[#allocation5 + $0xdd8] sm:$0xff]
    %v569 = vld [vmem:[#allocation5 + $0xde0] sm:$0xff]
    %v570 = vld [vmem:[#allocation5 + $0xde8] sm:$0xff]
    %v571 = vld [vmem:[#allocation5 + $0xdf0] sm:$0xff]
    %v572 = vld [vmem:[#allocation5 + $0xdf8] sm:$0xff]
    %v573 = vld [vmem:[#allocation5 + $0xe00] sm:$0xff]
    %v574 = vld [vmem:[#allocation5 + $0xe08] sm:$0xff]
    %v575 = vld [vmem:[#allocation5 + $0xe10] sm:$0xff]
    %v576 = vld [vmem:[#allocation5 + $0xe18] sm:$0xff]
    %v577 = vld [vmem:[#allocation5 + $0xe20] sm:$0xff]
    %v578 = vld [vmem:[#allocation5 + $0xe28] sm:$0xff]
    %v579 = vld [vmem:[#allocation5 + $0xe30] sm:$0xff]
    %v580 = vld [vmem:[#allocation5 + $0xe38] sm:$0xff]
    %v581 = vld [vmem:[#allocation5 + $0xe40] sm:$0xff]
    %v582 = vld [vmem:[#allocation5 + $0xe48] sm:$0xff]
    %v583 = vld [vmem:[#allocation5 + $0xe50] sm:$0xff]
    %v584 = vld [vmem:[#allocation5 + $0xe58] sm:$0xff]
    %v585 = vld [vmem:[#allocation5 + $0xe60] sm:$0xff]
    %v586 = vld [vmem:[#allocation5 + $0xe68] sm:$0xff]
    %v587 = vld [vmem:[#allocation5 + $0xe70] sm:$0xff]
    %v588 = vld [vmem:[#allocation5 + $0xe78] sm:$0xff]
    %v589 = vld [vmem:[#allocation5 + $0xe80] sm:$0xff]
    %v590 = vld [vmem:[#allocation5 + $0xe88] sm:$0xff]
    %v591 = vld [vmem:[#allocation5 + $0xe90] sm:$0xff]
    %v592 = vld [vmem:[#allocation5 + $0xe98] sm:$0xff]
    %v593 = vld [vmem:[#allocation5 + $0xea0] sm:$0xff]
    %v594 = vld [vmem:[#allocation5 + $0xea8] sm:$0xff]
    %v595 = vld [vmem:[#allocation5 + $0xeb0] sm:$0xff]
    %v596 = vld [vmem:[#allocation5 + $0xeb8] sm:$0xff]
    %v597 = vld [vmem:[#allocation5 + $0xec0] sm:$0xff]
    %v598 = vld [vmem:[#allocation5 + $0xec8] sm:$0xff]
    %v599 = vld [vmem:[#allocation5 + $0xed0] sm:$0xff]
    %v600 = vld [vmem:[#allocation5 + $0xed8] sm:$0xff]
    %v601 = vld [vmem:[#allocation5 + $0xee0] sm:$0xff]
    %v602 = vld [vmem:[#allocation5 + $0xee8] sm:$0xff]
    %v603 = vld [vmem:[#allocation5 + $0xef0] sm:$0xff]
    %v604 = vld [vmem:[#allocation5 + $0xef8] sm:$0xff]
    %v605 = vld [vmem:[#allocation5 + $0xf00] sm:$0xff]
    %v606 = vld [vmem:[#allocation5 + $0xf08] sm:$0xff]
    %v607 = vld [vmem:[#allocation5 + $0xf10] sm:$0xff]
    %v608 = vld [vmem:[#allocation5 + $0xf18] sm:$0xff]
    %v609 = vld [vmem:[#allocation5 + $0xf20] sm:$0xff]
    %v610 = vld [vmem:[#allocation5 + $0xf28] sm:$0xff]
    %v611 = vld [vmem:[#allocation5 + $0xf30] sm:$0xff]
    %v612 = vld [vmem:[#allocation5 + $0xf38] sm:$0xff]
    %v613 = vld [vmem:[#allocation5 + $0xf40] sm:$0xff]
    %v614 = vld [vmem:[#allocation5 + $0xf48] sm:$0xff]
    %v615 = vld [vmem:[#allocation5 + $0xf50] sm:$0xff]
    %v616 = vld [vmem:[#allocation5 + $0xf58] sm:$0xff]
    %v617 = vld [vmem:[#allocation5 + $0xf60] sm:$0xff]
    %v618 = vld [vmem:[#allocation5 + $0xf68] sm:$0xff]
    %v619 = vld [vmem:[#allocation5 + $0xf70] sm:$0xff]
    %v620 = vld [vmem:[#allocation5 + $0xf78] sm:$0xff]
    %v621 = vld [vmem:[#allocation5 + $0xf80] sm:$0xff]
    %v622 = vld [vmem:[#allocation5 + $0xf88] sm:$0xff]
    %v623 = vld [vmem:[#allocation5 + $0xf90] sm:$0xff]
    %v624 = vld [vmem:[#allocation5 + $0xf98] sm:$0xff]
    %v625 = vld [vmem:[#allocation5 + $0xfa0] sm:$0xff]
    %v626 = vld [vmem:[#allocation5 + $0xfa8] sm:$0xff]
    %v627 = vld [vmem:[#allocation5 + $0xfb0] sm:$0xff]
    %v628 = vld [vmem:[#allocation5 + $0xfb8] sm:$0xff]
    %v629 = vld [vmem:[#allocation5 + $0xfc0] sm:$0xff]
    %v630 = vld [vmem:[#allocation5 + $0xfc8] sm:$0xff]
    %v631 = vld [vmem:[#allocation5 + $0xfd0] sm:$0xff]
    %v632 = vld [vmem:[#allocation5 + $0xfd8] sm:$0xff]
    %v633 = vld [vmem:[#allocation5 + $0xfe0] sm:$0xff]
    %v634 = vld [vmem:[#allocation5 + $0xfe8] sm:$0xff]
    %v635 = vld [vmem:[#allocation5 + $0xff0] sm:$0xff]
    %v636 = vld [vmem:[#allocation5 + $0xff8] sm:$0xff]
    %v637 = vld [vmem:[#allocation7] sm:$0xf]
    %v639 = vlaneseq
    %v640 = vshrl.u32 %v639, 7
    %v641 = vsub.s32 0, %v640
    %v642 = vrot.slane %v637, %v641
    %v643 = vlaneseq
    %v644 = vshrl.u32 %v643, 7
    %v645 = vsub.s32 1, %v644
    %v646 = vrot.slane %v637, %v645
    %v647 = vlaneseq
    %v648 = vshrl.u32 %v647, 7
    %v649 = vsub.s32 2, %v648
    %v650 = vrot.slane %v637, %v649
    %v651 = vlaneseq
    %v652 = vshrl.u32 %v651, 7
    %v653 = vsub.s32 3, %v652
    %v654 = vrot.slane %v637, %v653
    %659 = vmatprep.subr.mxu0 %v186
    %660 = vmatpush1.msra.mxu0 %v185
    %661 = vmatprep.subr.mxu0 %v182
    %662 = vmatpush1.msra.mxu0 %v181
    %663 = vmatprep.subr.mxu0 %v178
    %664 = vmatpush1.msra.mxu0 %v177
    %665 = vmatprep.subr.mxu0 %v174
    %666 = vmatpush1.msra.mxu0 %v173
    %667 = vmatprep.subr.mxu0 %v170
    %668 = vmatpush1.msra.mxu0 %v169
    %669 = vmatprep.subr.mxu0 %v166
    %670 = vmatpush1.msra.mxu0 %v165
    %671 = vmatprep.subr.mxu0 %v162
    %672 = vmatpush1.msra.mxu0 %v161
    %673 = vmatprep.subr.mxu0 %v158
    %674 = vmatpush1.msra.mxu0 %v157
    %675 = vmatprep.subr.mxu0 %v154
    %676 = vmatpush1.msra.mxu0 %v153
    %677 = vmatprep.subr.mxu0 %v150
    %678 = vmatpush1.msra.mxu0 %v149
    %679 = vmatprep.subr.mxu0 %v146
    %680 = vmatpush1.msra.mxu0 %v145
    %681 = vmatprep.subr.mxu0 %v142
    %682 = vmatpush1.msra.mxu0 %v141
    %683 = vmatprep.subr.mxu0 %v138
    %684 = vmatpush1.msra.mxu0 %v137
    %685 = vmatprep.subr.mxu0 %v134
    %686 = vmatpush1.msra.mxu0 %v133
    %687 = vmatprep.subr.mxu0 %v130
    %688 = vmatpush1.msra.mxu0 %v129
    %689 = vmatprep.subr.mxu0 %v126
    %690 = vmatpush1.msra.mxu0 %v125
    %691 = vmatprep.subr.mxu0 %v250
    %692 = vmatpush2.msra.mxu0 %v249
    %693 = vmatprep.subr.mxu0 %v246
    %694 = vmatpush2.msra.mxu0 %v245
    %695 = vmatprep.subr.mxu0 %v242
    %696 = vmatpush2.msra.mxu0 %v241
    %697 = vmatprep.subr.mxu0 %v238
    %698 = vmatpush2.msra.mxu0 %v237
    %699 = vmatprep.subr.mxu0 %v234
    %700 = vmatpush2.msra.mxu0 %v233
    %701 = vmatprep.subr.mxu0 %v230
    %702 = vmatpush2.msra.mxu0 %v229
    %703 = vmatprep.subr.mxu0 %v226
    %704 = vmatpush2.msra.mxu0 %v225
    %705 = vmatprep.subr.mxu0 %v222
    %706 = vmatpush2.msra.mxu0 %v221
    %707 = vmatprep.subr.mxu0 %v218
    %708 = vmatpush2.msra.mxu0 %v217
    %709 = vmatprep.subr.mxu0 %v214
    %710 = vmatpush2.msra.mxu0 %v213
    %711 = vmatprep.subr.mxu0 %v210
    %712 = vmatpush2.msra.mxu0 %v209
    %713 = vmatprep.subr.mxu0 %v206
    %714 = vmatpush2.msra.mxu0 %v205
    %715 = vmatprep.subr.mxu0 %v202
    %716 = vmatpush2.msra.mxu0 %v201
    %717 = vmatprep.subr.mxu0 %v198
    %718 = vmatpush2.msra.mxu0 %v197
    %719 = vmatprep.subr.mxu0 %v194
    %720 = vmatpush2.msra.mxu0 %v193
    %721 = vmatprep.subr.mxu0 %v190
    %722 = vmatpush2.msra.mxu0 %v189
    %723 = vmatprep.mubr.f32.mxu0 %v118
    %724 = vmatmul.mubr.f32.gmra.mxu0 %v117
    %v725 = vpop.f32.mrf.mxu0
    %v726 = vadd.f32 %v642, %v725
    %v727 = vpop.f32.mrf.mxu0
    %v728 = vadd.f32 %v646, %v727
    %729 = vdwg.mxu0
    %730 = vmatprep.subr.mxu0 %v314
    %731 = vmatpush1.msra.mxu0 %v313
    %732 = vmatprep.subr.mxu0 %v310
    %733 = vmatpush1.msra.mxu0 %v309
    %734 = vmatprep.subr.mxu0 %v306
    %735 = vmatpush1.msra.mxu0 %v305
    %736 = vmatprep.subr.mxu0 %v302
    %737 = vmatpush1.msra.mxu0 %v301
    %738 = vmatprep.subr.mxu0 %v298
    %739 = vmatpush1.msra.mxu0 %v297
    %740 = vmatprep.subr.mxu0 %v294
    %741 = vmatpush1.msra.mxu0 %v293
    %742 = vmatprep.subr.mxu0 %v290
    %743 = vmatpush1.msra.mxu0 %v289
    %744 = vmatprep.subr.mxu0 %v286
    %745 = vmatpush1.msra.mxu0 %v285
    %746 = vmatprep.subr.mxu0 %v282
    %747 = vmatpush1.msra.mxu0 %v281
    %748 = vmatprep.subr.mxu0 %v278
    %749 = vmatpush1.msra.mxu0 %v277
    %750 = vmatprep.subr.mxu0 %v274
    %751 = vmatpush1.msra.mxu0 %v273
    %752 = vmatprep.subr.mxu0 %v270
    %753 = vmatpush1.msra.mxu0 %v269
    %754 = vmatprep.subr.mxu0 %v266
    %755 = vmatpush1.msra.mxu0 %v265
    %756 = vmatprep.subr.mxu0 %v262
    %757 = vmatpush1.msra.mxu0 %v261
    %758 = vmatprep.subr.mxu0 %v258
    %759 = vmatpush1.msra.mxu0 %v257
    %760 = vmatprep.subr.mxu0 %v254
    %761 = vmatpush1.msra.mxu0 %v253
    %762 = vmatprep.subr.mxu0 %v378
    %763 = vmatpush2.msra.mxu0 %v377
    %764 = vmatprep.subr.mxu0 %v374
    %765 = vmatpush2.msra.mxu0 %v373
    %766 = vmatprep.subr.mxu0 %v370
    %767 = vmatpush2.msra.mxu0 %v369
    %768 = vmatprep.subr.mxu0 %v366
    %769 = vmatpush2.msra.mxu0 %v365
    %770 = vmatprep.subr.mxu0 %v362
    %771 = vmatpush2.msra.mxu0 %v361
    %772 = vmatprep.subr.mxu0 %v358
    %773 = vmatpush2.msra.mxu0 %v357
    %774 = vmatprep.subr.mxu0 %v354
    %775 = vmatpush2.msra.mxu0 %v353
    %776 = vmatprep.subr.mxu0 %v350
    %777 = vmatpush2.msra.mxu0 %v349
    %778 = vmatprep.subr.mxu0 %v346
    %779 = vmatpush2.msra.mxu0 %v345
    %780 = vmatprep.subr.mxu0 %v342
    %781 = vmatpush2.msra.mxu0 %v341
    %782 = vmatprep.subr.mxu0 %v338
    %783 = vmatpush2.msra.mxu0 %v337
    %784 = vmatprep.subr.mxu0 %v334
    %785 = vmatpush2.msra.mxu0 %v333
    %786 = vmatprep.subr.mxu0 %v330
    %787 = vmatpush2.msra.mxu0 %v329
    %788 = vmatprep.subr.mxu0 %v326
    %789 = vmatpush2.msra.mxu0 %v325
    %790 = vmatprep.subr.mxu0 %v322
    %791 = vmatpush2.msra.mxu0 %v321
    %792 = vmatprep.subr.mxu0 %v318
    %793 = vmatpush2.msra.mxu0 %v317
    %794 = vmatprep.mubr.f32.mxu0 %v120
    %795 = vmatmul.mubr.f32.gmra.mxu0 %v119
    %v796 = vpop.f32.mrf.mxu0
    %v797 = vadd.f32 %v726, %v796
    %v798 = vpop.f32.mrf.mxu0
    %v799 = vadd.f32 %v728, %v798
    %800 = vdwg.mxu0
    %801 = vmatprep.subr.mxu0 %v442
    %802 = vmatpush1.msra.mxu0 %v441
    %803 = vmatprep.subr.mxu0 %v438
    %804 = vmatpush1.msra.mxu0 %v437
    %805 = vmatprep.subr.mxu0 %v434
    %806 = vmatpush1.msra.mxu0 %v433
    %807 = vmatprep.subr.mxu0 %v430
    %808 = vmatpush1.msra.mxu0 %v429
    %809 = vmatprep.subr.mxu0 %v426
    %810 = vmatpush1.msra.mxu0 %v425
    %811 = vmatprep.subr.mxu0 %v422
    %812 = vmatpush1.msra.mxu0 %v421
    %813 = vmatprep.subr.mxu0 %v418
    %814 = vmatpush1.msra.mxu0 %v417
    %815 = vmatprep.subr.mxu0 %v414
    %816 = vmatpush1.msra.mxu0 %v413
    %817 = vmatprep.subr.mxu0 %v410
    %818 = vmatpush1.msra.mxu0 %v409
    %819 = vmatprep.subr.mxu0 %v406
    %820 = vmatpush1.msra.mxu0 %v405
    %821 = vmatprep.subr.mxu0 %v402
    %822 = vmatpush1.msra.mxu0 %v401
    %823 = vmatprep.subr.mxu0 %v398
    %824 = vmatpush1.msra.mxu0 %v397
    %825 = vmatprep.subr.mxu0 %v394
    %826 = vmatpush1.msra.mxu0 %v393
    %827 = vmatprep.subr.mxu0 %v390
    %828 = vmatpush1.msra.mxu0 %v389
    %829 = vmatprep.subr.mxu0 %v386
    %830 = vmatpush1.msra.mxu0 %v385
    %831 = vmatprep.subr.mxu0 %v382
    %832 = vmatpush1.msra.mxu0 %v381
    %833 = vmatprep.subr.mxu0 %v506
    %834 = vmatpush2.msra.mxu0 %v505
    %835 = vmatprep.subr.mxu0 %v502
    %836 = vmatpush2.msra.mxu0 %v501
    %837 = vmatprep.subr.mxu0 %v498
    %838 = vmatpush2.msra.mxu0 %v497
    %839 = vmatprep.subr.mxu0 %v494
    %840 = vmatpush2.msra.mxu0 %v493
    %841 = vmatprep.subr.mxu0 %v490
    %842 = vmatpush2.msra.mxu0 %v489
    %843 = vmatprep.subr.mxu0 %v486
    %844 = vmatpush2.msra.mxu0 %v485
    %845 = vmatprep.subr.mxu0 %v482
    %846 = vmatpush2.msra.mxu0 %v481
    %847 = vmatprep.subr.mxu0 %v478
    %848 = vmatpush2.msra.mxu0 %v477
    %849 = vmatprep.subr.mxu0 %v474
    %850 = vmatpush2.msra.mxu0 %v473
    %851 = vmatprep.subr.mxu0 %v470
    %852 = vmatpush2.msra.mxu0 %v469
    %853 = vmatprep.subr.mxu0 %v466
    %854 = vmatpush2.msra.mxu0 %v465
    %855 = vmatprep.subr.mxu0 %v462
    %856 = vmatpush2.msra.mxu0 %v461
    %857 = vmatprep.subr.mxu0 %v458
    %858 = vmatpush2.msra.mxu0 %v457
    %859 = vmatprep.subr.mxu0 %v454
    %860 = vmatpush2.msra.mxu0 %v453
    %861 = vmatprep.subr.mxu0 %v450
    %862 = vmatpush2.msra.mxu0 %v449
    %863 = vmatprep.subr.mxu0 %v446
    %864 = vmatpush2.msra.mxu0 %v445
    %865 = vmatprep.mubr.f32.mxu0 %v122
    %866 = vmatmul.mubr.f32.gmra.mxu0 %v121
    %v867 = vpop.f32.mrf.mxu0
    %v868 = vadd.f32 %v797, %v867
    %v869 = vpop.f32.mrf.mxu0
    %v870 = vadd.f32 %v799, %v869
    %871 = vdwg.mxu0
    %872 = vmatprep.subr.mxu0 %v570
    %873 = vmatpush1.msra.mxu0 %v569
    %874 = vmatprep.subr.mxu0 %v566
    %875 = vmatpush1.msra.mxu0 %v565
    %876 = vmatprep.subr.mxu0 %v562
    %877 = vmatpush1.msra.mxu0 %v561
    %878 = vmatprep.subr.mxu0 %v558
    %879 = vmatpush1.msra.mxu0 %v557
    %880 = vmatprep.subr.mxu0 %v554
    %881 = vmatpush1.msra.mxu0 %v553
    %882 = vmatprep.subr.mxu0 %v550
    %883 = vmatpush1.msra.mxu0 %v549
    %884 = vmatprep.subr.mxu0 %v546
    %885 = vmatpush1.msra.mxu0 %v545
    %886 = vmatprep.subr.mxu0 %v542
    %887 = vmatpush1.msra.mxu0 %v541
    %888 = vmatprep.subr.mxu0 %v538
    %889 = vmatpush1.msra.mxu0 %v537
    %890 = vmatprep.subr.mxu0 %v534
    %891 = vmatpush1.msra.mxu0 %v533
    %892 = vmatprep.subr.mxu0 %v530
    %893 = vmatpush1.msra.mxu0 %v529
    %894 = vmatprep.subr.mxu0 %v526
    %895 = vmatpush1.msra.mxu0 %v525
    %896 = vmatprep.subr.mxu0 %v522
    %897 = vmatpush1.msra.mxu0 %v521
    %898 = vmatprep.subr.mxu0 %v518
    %899 = vmatpush1.msra.mxu0 %v517
    %900 = vmatprep.subr.mxu0 %v514
    %901 = vmatpush1.msra.mxu0 %v513
    %902 = vmatprep.subr.mxu0 %v510
    %903 = vmatpush1.msra.mxu0 %v509
    %904 = vmatprep.subr.mxu0 %v634
    %905 = vmatpush2.msra.mxu0 %v633
    %906 = vmatprep.subr.mxu0 %v630
    %907 = vmatpush2.msra.mxu0 %v629
    %908 = vmatprep.subr.mxu0 %v626
    %909 = vmatpush2.msra.mxu0 %v625
    %910 = vmatprep.subr.mxu0 %v622
    %911 = vmatpush2.msra.mxu0 %v621
    %912 = vmatprep.subr.mxu0 %v618
    %913 = vmatpush2.msra.mxu0 %v617
    %914 = vmatprep.subr.mxu0 %v614
    %915 = vmatpush2.msra.mxu0 %v613
    %916 = vmatprep.subr.mxu0 %v610
    %917 = vmatpush2.msra.mxu0 %v609
    %918 = vmatprep.subr.mxu0 %v606
    %919 = vmatpush2.msra.mxu0 %v605
    %920 = vmatprep.subr.mxu0 %v602
    %921 = vmatpush2.msra.mxu0 %v601
    %922 = vmatprep.subr.mxu0 %v598
    %923 = vmatpush2.msra.mxu0 %v597
    %924 = vmatprep.subr.mxu0 %v594
    %925 = vmatpush2.msra.mxu0 %v593
    %926 = vmatprep.subr.mxu0 %v590
    %927 = vmatpush2.msra.mxu0 %v589
    %928 = vmatprep.subr.mxu0 %v586
    %929 = vmatpush2.msra.mxu0 %v585
    %930 = vmatprep.subr.mxu0 %v582
    %931 = vmatpush2.msra.mxu0 %v581
    %932 = vmatprep.subr.mxu0 %v578
    %933 = vmatpush2.msra.mxu0 %v577
    %934 = vmatprep.subr.mxu0 %v574
    %935 = vmatpush2.msra.mxu0 %v573
    %936 = vmatprep.mubr.f32.mxu0 %v124
    %937 = vmatmul.mubr.f32.gmra.mxu0 %v123
    %v938 = vpop.f32.mrf.mxu0
    %v939 = vadd.f32 %v868, %v938
    %v940 = vpop.f32.mrf.mxu0
    %v941 = vadd.f32 %v870, %v940
    %942 = vdwg.mxu0
    %943 = vmatprep.subr.mxu0 %v188
    %944 = vmatpush1.msra.mxu0 %v187
    %945 = vmatprep.subr.mxu0 %v184
    %946 = vmatpush1.msra.mxu0 %v183
    %947 = vmatprep.subr.mxu0 %v180
    %948 = vmatpush1.msra.mxu0 %v179
    %949 = vmatprep.subr.mxu0 %v176
    %950 = vmatpush1.msra.mxu0 %v175
    %951 = vmatprep.subr.mxu0 %v172
    %952 = vmatpush1.msra.mxu0 %v171
    %953 = vmatprep.subr.mxu0 %v168
    %954 = vmatpush1.msra.mxu0 %v167
    %955 = vmatprep.subr.mxu0 %v164
    %956 = vmatpush1.msra.mxu0 %v163
    %957 = vmatprep.subr.mxu0 %v160
    %958 = vmatpush1.msra.mxu0 %v159
    %959 = vmatprep.subr.mxu0 %v156
    %960 = vmatpush1.msra.mxu0 %v155
    %961 = vmatprep.subr.mxu0 %v152
    %962 = vmatpush1.msra.mxu0 %v151
    %963 = vmatprep.subr.mxu0 %v148
    %964 = vmatpush1.msra.mxu0 %v147
    %965 = vmatprep.subr.mxu0 %v144
    %966 = vmatpush1.msra.mxu0 %v143
    %967 = vmatprep.subr.mxu0 %v140
    %968 = vmatpush1.msra.mxu0 %v139
    %969 = vmatprep.subr.mxu0 %v136
    %970 = vmatpush1.msra.mxu0 %v135
    %971 = vmatprep.subr.mxu0 %v132
    %972 = vmatpush1.msra.mxu0 %v131
    %973 = vmatprep.subr.mxu0 %v128
    %974 = vmatpush1.msra.mxu0 %v127
    %975 = vmatprep.subr.mxu0 %v252
    %976 = vmatpush2.msra.mxu0 %v251
    %977 = vmatprep.subr.mxu0 %v248
    %978 = vmatpush2.msra.mxu0 %v247
    %979 = vmatprep.subr.mxu0 %v244
    %980 = vmatpush2.msra.mxu0 %v243
    %981 = vmatprep.subr.mxu0 %v240
    %982 = vmatpush2.msra.mxu0 %v239
    %983 = vmatprep.subr.mxu0 %v236
    %984 = vmatpush2.msra.mxu0 %v235
    %985 = vmatprep.subr.mxu0 %v232
    %986 = vmatpush2.msra.mxu0 %v231
    %987 = vmatprep.subr.mxu0 %v228
    %988 = vmatpush2.msra.mxu0 %v227
    %989 = vmatprep.subr.mxu0 %v224
    %990 = vmatpush2.msra.mxu0 %v223
    %991 = vmatprep.subr.mxu0 %v220
    %992 = vmatpush2.msra.mxu0 %v219
    %993 = vmatprep.subr.mxu0 %v216
    %994 = vmatpush2.msra.mxu0 %v215
    %995 = vmatprep.subr.mxu0 %v212
    %996 = vmatpush2.msra.mxu0 %v211
    %997 = vmatprep.subr.mxu0 %v208
    %998 = vmatpush2.msra.mxu0 %v207
    %999 = vmatprep.subr.mxu0 %v204
    %1000 = vmatpush2.msra.mxu0 %v203
    %1001 = vmatprep.subr.mxu0 %v200
    %1002 = vmatpush2.msra.mxu0 %v199
    %1003 = vmatprep.subr.mxu0 %v196
    %1004 = vmatpush2.msra.mxu0 %v195
    %1005 = vmatprep.subr.mxu0 %v192
    %1006 = vmatpush2.msra.mxu0 %v191
    %1007 = vmatprep.mubr.f32.mxu0 %v118
    %1008 = vmatmul.mubr.f32.gmra.mxu0 %v117
    %v1009 = vpop.f32.mrf.mxu0
    %v1010 = vadd.f32 %v650, %v1009
    %v1011 = vpop.f32.mrf.mxu0
    %v1012 = vadd.f32 %v654, %v1011
    %1013 = vdwg.mxu0
    %1014 = vmatprep.subr.mxu0 %v316
    %1015 = vmatpush1.msra.mxu0 %v315
    %1016 = vmatprep.subr.mxu0 %v312
    %1017 = vmatpush1.msra.mxu0 %v311
    %1018 = vmatprep.subr.mxu0 %v308
    %1019 = vmatpush1.msra.mxu0 %v307
    %1020 = vmatprep.subr.mxu0 %v304
    %1021 = vmatpush1.msra.mxu0 %v303
    %1022 = vmatprep.subr.mxu0 %v300
    %1023 = vmatpush1.msra.mxu0 %v299
    %1024 = vmatprep.subr.mxu0 %v296
    %1025 = vmatpush1.msra.mxu0 %v295
    %1026 = vmatprep.subr.mxu0 %v292
    %1027 = vmatpush1.msra.mxu0 %v291
    %1028 = vmatprep.subr.mxu0 %v288
    %1029 = vmatpush1.msra.mxu0 %v287
    %1030 = vmatprep.subr.mxu0 %v284
    %1031 = vmatpush1.msra.mxu0 %v283
    %1032 = vmatprep.subr.mxu0 %v280
    %1033 = vmatpush1.msra.mxu0 %v279
    %1034 = vmatprep.subr.mxu0 %v276
    %1035 = vmatpush1.msra.mxu0 %v275
    %1036 = vmatprep.subr.mxu0 %v272
    %1037 = vmatpush1.msra.mxu0 %v271
    %1038 = vmatprep.subr.mxu0 %v268
    %1039 = vmatpush1.msra.mxu0 %v267
    %1040 = vmatprep.subr.mxu0 %v264
    %1041 = vmatpush1.msra.mxu0 %v263
    %1042 = vmatprep.subr.mxu0 %v260
    %1043 = vmatpush1.msra.mxu0 %v259
    %1044 = vmatprep.subr.mxu0 %v256
    %1045 = vmatpush1.msra.mxu0 %v255
    %1046 = vmatprep.subr.mxu0 %v380
    %1047 = vmatpush2.msra.mxu0 %v379
    %1048 = vmatprep.subr.mxu0 %v376
    %1049 = vmatpush2.msra.mxu0 %v375
    %1050 = vmatprep.subr.mxu0 %v372
    %1051 = vmatpush2.msra.mxu0 %v371
    %1052 = vmatprep.subr.mxu0 %v368
    %1053 = vmatpush2.msra.mxu0 %v367
    %1054 = vmatprep.subr.mxu0 %v364
    %1055 = vmatpush2.msra.mxu0 %v363
    %1056 = vmatprep.subr.mxu0 %v360
    %1057 = vmatpush2.msra.mxu0 %v359
    %1058 = vmatprep.subr.mxu0 %v356
    %1059 = vmatpush2.msra.mxu0 %v355
    %1060 = vmatprep.subr.mxu0 %v352
    %1061 = vmatpush2.msra.mxu0 %v351
    %1062 = vmatprep.subr.mxu0 %v348
    %1063 = vmatpush2.msra.mxu0 %v347
    %1064 = vmatprep.subr.mxu0 %v344
    %1065 = vmatpush2.msra.mxu0 %v343
    %1066 = vmatprep.subr.mxu0 %v340
    %1067 = vmatpush2.msra.mxu0 %v339
    %1068 = vmatprep.subr.mxu0 %v336
    %1069 = vmatpush2.msra.mxu0 %v335
    %1070 = vmatprep.subr.mxu0 %v332
    %1071 = vmatpush2.msra.mxu0 %v331
    %1072 = vmatprep.subr.mxu0 %v328
    %1073 = vmatpush2.msra.mxu0 %v327
    %1074 = vmatprep.subr.mxu0 %v324
    %1075 = vmatpush2.msra.mxu0 %v323
    %1076 = vmatprep.subr.mxu0 %v320
    %1077 = vmatpush2.msra.mxu0 %v319
    %1078 = vmatprep.mubr.f32.mxu0 %v120
    %1079 = vmatmul.mubr.f32.gmra.mxu0 %v119
    %v1080 = vpop.f32.mrf.mxu0
    %v1081 = vadd.f32 %v1010, %v1080
    %v1082 = vpop.f32.mrf.mxu0
    %v1083 = vadd.f32 %v1012, %v1082
    %1084 = vdwg.mxu0
    %1085 = vmatprep.subr.mxu0 %v444
    %1086 = vmatpush1.msra.mxu0 %v443
    %1087 = vmatprep.subr.mxu0 %v440
    %1088 = vmatpush1.msra.mxu0 %v439
    %1089 = vmatprep.subr.mxu0 %v436
    %1090 = vmatpush1.msra.mxu0 %v435
    %1091 = vmatprep.subr.mxu0 %v432
    %1092 = vmatpush1.msra.mxu0 %v431
    %1093 = vmatprep.subr.mxu0 %v428
    %1094 = vmatpush1.msra.mxu0 %v427
    %1095 = vmatprep.subr.mxu0 %v424
    %1096 = vmatpush1.msra.mxu0 %v423
    %1097 = vmatprep.subr.mxu0 %v420
    %1098 = vmatpush1.msra.mxu0 %v419
    %1099 = vmatprep.subr.mxu0 %v416
    %1100 = vmatpush1.msra.mxu0 %v415
    %1101 = vmatprep.subr.mxu0 %v412
    %1102 = vmatpush1.msra.mxu0 %v411
    %1103 = vmatprep.subr.mxu0 %v408
    %1104 = vmatpush1.msra.mxu0 %v407
    %1105 = vmatprep.subr.mxu0 %v404
    %1106 = vmatpush1.msra.mxu0 %v403
    %1107 = vmatprep.subr.mxu0 %v400
    %1108 = vmatpush1.msra.mxu0 %v399
    %1109 = vmatprep.subr.mxu0 %v396
    %1110 = vmatpush1.msra.mxu0 %v395
    %1111 = vmatprep.subr.mxu0 %v392
    %1112 = vmatpush1.msra.mxu0 %v391
    %1113 = vmatprep.subr.mxu0 %v388
    %1114 = vmatpush1.msra.mxu0 %v387
    %1115 = vmatprep.subr.mxu0 %v384
    %1116 = vmatpush1.msra.mxu0 %v383
    %1117 = vmatprep.subr.mxu0 %v508
    %1118 = vmatpush2.msra.mxu0 %v507
    %1119 = vmatprep.subr.mxu0 %v504
    %1120 = vmatpush2.msra.mxu0 %v503
    %1121 = vmatprep.subr.mxu0 %v500
    %1122 = vmatpush2.msra.mxu0 %v499
    %1123 = vmatprep.subr.mxu0 %v496
    %1124 = vmatpush2.msra.mxu0 %v495
    %1125 = vmatprep.subr.mxu0 %v492
    %1126 = vmatpush2.msra.mxu0 %v491
    %1127 = vmatprep.subr.mxu0 %v488
    %1128 = vmatpush2.msra.mxu0 %v487
    %1129 = vmatprep.subr.mxu0 %v484
    %1130 = vmatpush2.msra.mxu0 %v483
    %1131 = vmatprep.subr.mxu0 %v480
    %1132 = vmatpush2.msra.mxu0 %v479
    %1133 = vmatprep.subr.mxu0 %v476
    %1134 = vmatpush2.msra.mxu0 %v475
    %1135 = vmatprep.subr.mxu0 %v472
    %1136 = vmatpush2.msra.mxu0 %v471
    %1137 = vmatprep.subr.mxu0 %v468
    %1138 = vmatpush2.msra.mxu0 %v467
    %1139 = vmatprep.subr.mxu0 %v464
    %1140 = vmatpush2.msra.mxu0 %v463
    %1141 = vmatprep.subr.mxu0 %v460
    %1142 = vmatpush2.msra.mxu0 %v459
    %1143 = vmatprep.subr.mxu0 %v456
    %1144 = vmatpush2.msra.mxu0 %v455
    %1145 = vmatprep.subr.mxu0 %v452
    %1146 = vmatpush2.msra.mxu0 %v451
    %1147 = vmatprep.subr.mxu0 %v448
    %1148 = vmatpush2.msra.mxu0 %v447
    %1149 = vmatprep.mubr.f32.mxu0 %v122
    %1150 = vmatmul.mubr.f32.gmra.mxu0 %v121
    %v1151 = vpop.f32.mrf.mxu0
    %v1152 = vadd.f32 %v1081, %v1151
    %v1153 = vpop.f32.mrf.mxu0
    %v1154 = vadd.f32 %v1083, %v1153
    %1155 = vdwg.mxu0
    %1156 = vmatprep.subr.mxu0 %v572
    %1157 = vmatpush1.msra.mxu0 %v571
    %1158 = vmatprep.subr.mxu0 %v568
    %1159 = vmatpush1.msra.mxu0 %v567
    %1160 = vmatprep.subr.mxu0 %v564
    %1161 = vmatpush1.msra.mxu0 %v563
    %1162 = vmatprep.subr.mxu0 %v560
    %1163 = vmatpush1.msra.mxu0 %v559
    %1164 = vmatprep.subr.mxu0 %v556
    %1165 = vmatpush1.msra.mxu0 %v555
    %1166 = vmatprep.subr.mxu0 %v552
    %1167 = vmatpush1.msra.mxu0 %v551
    %1168 = vmatprep.subr.mxu0 %v548
    %1169 = vmatpush1.msra.mxu0 %v547
    %1170 = vmatprep.subr.mxu0 %v544
    %1171 = vmatpush1.msra.mxu0 %v543
    %1172 = vmatprep.subr.mxu0 %v540
    %1173 = vmatpush1.msra.mxu0 %v539
    %1174 = vmatprep.subr.mxu0 %v536
    %1175 = vmatpush1.msra.mxu0 %v535
    %1176 = vmatprep.subr.mxu0 %v532
    %1177 = vmatpush1.msra.mxu0 %v531
    %1178 = vmatprep.subr.mxu0 %v528
    %1179 = vmatpush1.msra.mxu0 %v527
    %1180 = vmatprep.subr.mxu0 %v524
    %1181 = vmatpush1.msra.mxu0 %v523
    %1182 = vmatprep.subr.mxu0 %v520
    %1183 = vmatpush1.msra.mxu0 %v519
    %1184 = vmatprep.subr.mxu0 %v516
    %1185 = vmatpush1.msra.mxu0 %v515
    %1186 = vmatprep.subr.mxu0 %v512
    %1187 = vmatpush1.msra.mxu0 %v511
    %1188 = vmatprep.subr.mxu0 %v636
    %1189 = vmatpush2.msra.mxu0 %v635
    %1190 = vmatprep.subr.mxu0 %v632
    %1191 = vmatpush2.msra.mxu0 %v631
    %1192 = vmatprep.subr.mxu0 %v628
    %1193 = vmatpush2.msra.mxu0 %v627
    %1194 = vmatprep.subr.mxu0 %v624
    %1195 = vmatpush2.msra.mxu0 %v623
    %1196 = vmatprep.subr.mxu0 %v620
    %1197 = vmatpush2.msra.mxu0 %v619
    %1198 = vmatprep.subr.mxu0 %v616
    %1199 = vmatpush2.msra.mxu0 %v615
    %1200 = vmatprep.subr.mxu0 %v612
    %1201 = vmatpush2.msra.mxu0 %v611
    %1202 = vmatprep.subr.mxu0 %v608
    %1203 = vmatpush2.msra.mxu0 %v607
    %1204 = vmatprep.subr.mxu0 %v604
    %1205 = vmatpush2.msra.mxu0 %v603
    %1206 = vmatprep.subr.mxu0 %v600
    %1207 = vmatpush2.msra.mxu0 %v599
    %1208 = vmatprep.subr.mxu0 %v596
    %1209 = vmatpush2.msra.mxu0 %v595
    %1210 = vmatprep.subr.mxu0 %v592
    %1211 = vmatpush2.msra.mxu0 %v591
    %1212 = vmatprep.subr.mxu0 %v588
    %1213 = vmatpush2.msra.mxu0 %v587
    %1214 = vmatprep.subr.mxu0 %v584
    %1215 = vmatpush2.msra.mxu0 %v583
    %1216 = vmatprep.subr.mxu0 %v580
    %1217 = vmatpush2.msra.mxu0 %v579
    %1218 = vmatprep.subr.mxu0 %v576
    %1219 = vmatpush2.msra.mxu0 %v575
    %1220 = vmatprep.mubr.f32.mxu0 %v124
    %1221 = vmatmul.mubr.f32.gmra.mxu0 %v123
    %v1222 = vpop.f32.mrf.mxu0
    %v1223 = vadd.f32 %v1152, %v1222
    %v1224 = vpop.f32.mrf.mxu0
    %v1225 = vadd.f32 %v1154, %v1224
    %1226 = vdwg.mxu0
    %v1227 = vmax.f32 %v939, 0.0
    %v1228 = vmax.f32 %v941, 0.0
    %v1229 = vmax.f32 %v1223, 0.0
    %v1230 = vmax.f32 %v1225, 0.0
    %1231 = vst [vmem:[#allocation14] sm:$0xff] %v1227
    %1232 = vst [vmem:[#allocation14 + $0x8] sm:$0xff] %v1228
    %1233 = vst [vmem:[#allocation14 + $0x10] sm:$0xff] %v1229
    %1234 = vst [vmem:[#allocation14 + $0x18] sm:$0xff] %v1230
    %v1235 = vld [vmem:[#allocation8] sm:$0xff]
    %v1236 = vld [vmem:[#allocation8 + $0x8] sm:$0xff]
    %v1237 = vld [vmem:[#allocation8 + $0x10] sm:$0xff]
    %v1238 = vld [vmem:[#allocation8 + $0x18] sm:$0xff]
    %v1239 = vld [vmem:[#allocation8 + $0x20] sm:$0xff]
    %v1240 = vld [vmem:[#allocation8 + $0x28] sm:$0xff]
    %v1241 = vld [vmem:[#allocation8 + $0x30] sm:$0xff]
    %v1242 = vld [vmem:[#allocation8 + $0x38] sm:$0xff]
    %v1243 = vld [vmem:[#allocation8 + $0x40] sm:$0xff]
    %v1244 = vld [vmem:[#allocation8 + $0x48] sm:$0xff]
    %v1245 = vld [vmem:[#allocation8 + $0x50] sm:$0xff]
    %v1246 = vld [vmem:[#allocation8 + $0x58] sm:$0xff]
    %v1247 = vld [vmem:[#allocation8 + $0x60] sm:$0xff]
    %v1248 = vld [vmem:[#allocation8 + $0x68] sm:$0xff]
    %v1249 = vld [vmem:[#allocation8 + $0x70] sm:$0xff]
    %v1250 = vld [vmem:[#allocation8 + $0x78] sm:$0xff]
    %v1251 = vld [vmem:[#allocation8 + $0x80] sm:$0xff]
    %v1252 = vld [vmem:[#allocation8 + $0x88] sm:$0xff]
    %v1253 = vld [vmem:[#allocation8 + $0x90] sm:$0xff]
    %v1254 = vld [vmem:[#allocation8 + $0x98] sm:$0xff]
    %v1255 = vld [vmem:[#allocation8 + $0xa0] sm:$0xff]
    %v1256 = vld [vmem:[#allocation8 + $0xa8] sm:$0xff]
    %v1257 = vld [vmem:[#allocation8 + $0xb0] sm:$0xff]
    %v1258 = vld [vmem:[#allocation8 + $0xb8] sm:$0xff]
    %v1259 = vld [vmem:[#allocation8 + $0xc0] sm:$0xff]
    %v1260 = vld [vmem:[#allocation8 + $0xc8] sm:$0xff]
    %v1261 = vld [vmem:[#allocation8 + $0xd0] sm:$0xff]
    %v1262 = vld [vmem:[#allocation8 + $0xd8] sm:$0xff]
    %v1263 = vld [vmem:[#allocation8 + $0xe0] sm:$0xff]
    %v1264 = vld [vmem:[#allocation8 + $0xe8] sm:$0xff]
    %v1265 = vld [vmem:[#allocation8 + $0xf0] sm:$0xff]
    %v1266 = vld [vmem:[#allocation8 + $0xf8] sm:$0xff]
    %v1267 = vld [vmem:[#allocation8 + $0x100] sm:$0xff]
    %v1268 = vld [vmem:[#allocation8 + $0x108] sm:$0xff]
    %v1269 = vld [vmem:[#allocation8 + $0x110] sm:$0xff]
    %v1270 = vld [vmem:[#allocation8 + $0x118] sm:$0xff]
    %v1271 = vld [vmem:[#allocation8 + $0x120] sm:$0xff]
    %v1272 = vld [vmem:[#allocation8 + $0x128] sm:$0xff]
    %v1273 = vld [vmem:[#allocation8 + $0x130] sm:$0xff]
    %v1274 = vld [vmem:[#allocation8 + $0x138] sm:$0xff]
    %v1275 = vld [vmem:[#allocation8 + $0x140] sm:$0xff]
    %v1276 = vld [vmem:[#allocation8 + $0x148] sm:$0xff]
    %v1277 = vld [vmem:[#allocation8 + $0x150] sm:$0xff]
    %v1278 = vld [vmem:[#allocation8 + $0x158] sm:$0xff]
    %v1279 = vld [vmem:[#allocation8 + $0x160] sm:$0xff]
    %v1280 = vld [vmem:[#allocation8 + $0x168] sm:$0xff]
    %v1281 = vld [vmem:[#allocation8 + $0x170] sm:$0xff]
    %v1282 = vld [vmem:[#allocation8 + $0x178] sm:$0xff]
    %v1283 = vld [vmem:[#allocation8 + $0x180] sm:$0xff]
    %v1284 = vld [vmem:[#allocation8 + $0x188] sm:$0xff]
    %v1285 = vld [vmem:[#allocation8 + $0x190] sm:$0xff]
    %v1286 = vld [vmem:[#allocation8 + $0x198] sm:$0xff]
    %v1287 = vld [vmem:[#allocation8 + $0x1a0] sm:$0xff]
    %v1288 = vld [vmem:[#allocation8 + $0x1a8] sm:$0xff]
    %v1289 = vld [vmem:[#allocation8 + $0x1b0] sm:$0xff]
    %v1290 = vld [vmem:[#allocation8 + $0x1b8] sm:$0xff]
    %v1291 = vld [vmem:[#allocation8 + $0x1c0] sm:$0xff]
    %v1292 = vld [vmem:[#allocation8 + $0x1c8] sm:$0xff]
    %v1293 = vld [vmem:[#allocation8 + $0x1d0] sm:$0xff]
    %v1294 = vld [vmem:[#allocation8 + $0x1d8] sm:$0xff]
    %v1295 = vld [vmem:[#allocation8 + $0x1e0] sm:$0xff]
    %v1296 = vld [vmem:[#allocation8 + $0x1e8] sm:$0xff]
    %v1297 = vld [vmem:[#allocation8 + $0x1f0] sm:$0xff]
    %v1298 = vld [vmem:[#allocation8 + $0x1f8] sm:$0xff]
    %v1299 = vld [vmem:[#allocation8 + $0x200] sm:$0xff]
    %v1300 = vld [vmem:[#allocation8 + $0x208] sm:$0xff]
    %v1301 = vld [vmem:[#allocation8 + $0x210] sm:$0xff]
    %v1302 = vld [vmem:[#allocation8 + $0x218] sm:$0xff]
    %v1303 = vld [vmem:[#allocation8 + $0x220] sm:$0xff]
    %v1304 = vld [vmem:[#allocation8 + $0x228] sm:$0xff]
    %v1305 = vld [vmem:[#allocation8 + $0x230] sm:$0xff]
    %v1306 = vld [vmem:[#allocation8 + $0x238] sm:$0xff]
    %v1307 = vld [vmem:[#allocation8 + $0x240] sm:$0xff]
    %v1308 = vld [vmem:[#allocation8 + $0x248] sm:$0xff]
    %v1309 = vld [vmem:[#allocation8 + $0x250] sm:$0xff]
    %v1310 = vld [vmem:[#allocation8 + $0x258] sm:$0xff]
    %v1311 = vld [vmem:[#allocation8 + $0x260] sm:$0xff]
    %v1312 = vld [vmem:[#allocation8 + $0x268] sm:$0xff]
    %v1313 = vld [vmem:[#allocation8 + $0x270] sm:$0xff]
    %v1314 = vld [vmem:[#allocation8 + $0x278] sm:$0xff]
    %v1315 = vld [vmem:[#allocation8 + $0x280] sm:$0xff]
    %v1316 = vld [vmem:[#allocation8 + $0x288] sm:$0xff]
    %v1317 = vld [vmem:[#allocation8 + $0x290] sm:$0xff]
    %v1318 = vld [vmem:[#allocation8 + $0x298] sm:$0xff]
    %v1319 = vld [vmem:[#allocation8 + $0x2a0] sm:$0xff]
    %v1320 = vld [vmem:[#allocation8 + $0x2a8] sm:$0xff]
    %v1321 = vld [vmem:[#allocation8 + $0x2b0] sm:$0xff]
    %v1322 = vld [vmem:[#allocation8 + $0x2b8] sm:$0xff]
    %v1323 = vld [vmem:[#allocation8 + $0x2c0] sm:$0xff]
    %v1324 = vld [vmem:[#allocation8 + $0x2c8] sm:$0xff]
    %v1325 = vld [vmem:[#allocation8 + $0x2d0] sm:$0xff]
    %v1326 = vld [vmem:[#allocation8 + $0x2d8] sm:$0xff]
    %v1327 = vld [vmem:[#allocation8 + $0x2e0] sm:$0xff]
    %v1328 = vld [vmem:[#allocation8 + $0x2e8] sm:$0xff]
    %v1329 = vld [vmem:[#allocation8 + $0x2f0] sm:$0xff]
    %v1330 = vld [vmem:[#allocation8 + $0x2f8] sm:$0xff]
    %v1331 = vld [vmem:[#allocation8 + $0x300] sm:$0xff]
    %v1332 = vld [vmem:[#allocation8 + $0x308] sm:$0xff]
    %v1333 = vld [vmem:[#allocation8 + $0x310] sm:$0xff]
    %v1334 = vld [vmem:[#allocation8 + $0x318] sm:$0xff]
    %v1335 = vld [vmem:[#allocation8 + $0x320] sm:$0xff]
    %v1336 = vld [vmem:[#allocation8 + $0x328] sm:$0xff]
    %v1337 = vld [vmem:[#allocation8 + $0x330] sm:$0xff]
    %v1338 = vld [vmem:[#allocation8 + $0x338] sm:$0xff]
    %v1339 = vld [vmem:[#allocation8 + $0x340] sm:$0xff]
    %v1340 = vld [vmem:[#allocation8 + $0x348] sm:$0xff]
    %v1341 = vld [vmem:[#allocation8 + $0x350] sm:$0xff]
    %v1342 = vld [vmem:[#allocation8 + $0x358] sm:$0xff]
    %v1343 = vld [vmem:[#allocation8 + $0x360] sm:$0xff]
    %v1344 = vld [vmem:[#allocation8 + $0x368] sm:$0xff]
    %v1345 = vld [vmem:[#allocation8 + $0x370] sm:$0xff]
    %v1346 = vld [vmem:[#allocation8 + $0x378] sm:$0xff]
    %v1347 = vld [vmem:[#allocation8 + $0x380] sm:$0xff]
    %v1348 = vld [vmem:[#allocation8 + $0x388] sm:$0xff]
    %v1349 = vld [vmem:[#allocation8 + $0x390] sm:$0xff]
    %v1350 = vld [vmem:[#allocation8 + $0x398] sm:$0xff]
    %v1351 = vld [vmem:[#allocation8 + $0x3a0] sm:$0xff]
    %v1352 = vld [vmem:[#allocation8 + $0x3a8] sm:$0xff]
    %v1353 = vld [vmem:[#allocation8 + $0x3b0] sm:$0xff]
    %v1354 = vld [vmem:[#allocation8 + $0x3b8] sm:$0xff]
    %v1355 = vld [vmem:[#allocation8 + $0x3c0] sm:$0xff]
    %v1356 = vld [vmem:[#allocation8 + $0x3c8] sm:$0xff]
    %v1357 = vld [vmem:[#allocation8 + $0x3d0] sm:$0xff]
    %v1358 = vld [vmem:[#allocation8 + $0x3d8] sm:$0xff]
    %v1359 = vld [vmem:[#allocation8 + $0x3e0] sm:$0xff]
    %v1360 = vld [vmem:[#allocation8 + $0x3e8] sm:$0xff]
    %v1361 = vld [vmem:[#allocation8 + $0x3f0] sm:$0xff]
    %v1362 = vld [vmem:[#allocation8 + $0x3f8] sm:$0xff]
    %v1363 = vld [vmem:[#allocation10] sm:$0x3]
    %v1365 = vlaneseq
    %v1366 = vshrl.u32 %v1365, 7
    %v1367 = vsub.s32 0, %v1366
    %v1368 = vrot.slane %v1363, %v1367
    %v1369 = vlaneseq
    %v1370 = vshrl.u32 %v1369, 7
    %v1371 = vsub.s32 1, %v1370
    %v1372 = vrot.slane %v1363, %v1371
    %1375 = vmatprep.subr.mxu0 %v1266
    %1376 = vmatpush1.msra.mxu0 %v1265
    %1377 = vmatprep.subr.mxu0 %v1264
    %1378 = vmatpush1.msra.mxu0 %v1263
    %1379 = vmatprep.subr.mxu0 %v1262
    %1380 = vmatpush1.msra.mxu0 %v1261
    %1381 = vmatprep.subr.mxu0 %v1260
    %1382 = vmatpush1.msra.mxu0 %v1259
    %1383 = vmatprep.subr.mxu0 %v1258
    %1384 = vmatpush1.msra.mxu0 %v1257
    %1385 = vmatprep.subr.mxu0 %v1256
    %1386 = vmatpush1.msra.mxu0 %v1255
    %1387 = vmatprep.subr.mxu0 %v1254
    %1388 = vmatpush1.msra.mxu0 %v1253
    %1389 = vmatprep.subr.mxu0 %v1252
    %1390 = vmatpush1.msra.mxu0 %v1251
    %1391 = vmatprep.subr.mxu0 %v1250
    %1392 = vmatpush1.msra.mxu0 %v1249
    %1393 = vmatprep.subr.mxu0 %v1248
    %1394 = vmatpush1.msra.mxu0 %v1247
    %1395 = vmatprep.subr.mxu0 %v1246
    %1396 = vmatpush1.msra.mxu0 %v1245
    %1397 = vmatprep.subr.mxu0 %v1244
    %1398 = vmatpush1.msra.mxu0 %v1243
    %1399 = vmatprep.subr.mxu0 %v1242
    %1400 = vmatpush1.msra.mxu0 %v1241
    %1401 = vmatprep.subr.mxu0 %v1240
    %1402 = vmatpush1.msra.mxu0 %v1239
    %1403 = vmatprep.subr.mxu0 %v1238
    %1404 = vmatpush1.msra.mxu0 %v1237
    %1405 = vmatprep.subr.mxu0 %v1236
    %1406 = vmatpush1.msra.mxu0 %v1235
    %1407 = vmatprep.subr.mxu0 %v1298
    %1408 = vmatpush2.msra.mxu0 %v1297
    %1409 = vmatprep.subr.mxu0 %v1296
    %1410 = vmatpush2.msra.mxu0 %v1295
    %1411 = vmatprep.subr.mxu0 %v1294
    %1412 = vmatpush2.msra.mxu0 %v1293
    %1413 = vmatprep.subr.mxu0 %v1292
    %1414 = vmatpush2.msra.mxu0 %v1291
    %1415 = vmatprep.subr.mxu0 %v1290
    %1416 = vmatpush2.msra.mxu0 %v1289
    %1417 = vmatprep.subr.mxu0 %v1288
    %1418 = vmatpush2.msra.mxu0 %v1287
    %1419 = vmatprep.subr.mxu0 %v1286
    %1420 = vmatpush2.msra.mxu0 %v1285
    %1421 = vmatprep.subr.mxu0 %v1284
    %1422 = vmatpush2.msra.mxu0 %v1283
    %1423 = vmatprep.subr.mxu0 %v1282
    %1424 = vmatpush2.msra.mxu0 %v1281
    %1425 = vmatprep.subr.mxu0 %v1280
    %1426 = vmatpush2.msra.mxu0 %v1279
    %1427 = vmatprep.subr.mxu0 %v1278
    %1428 = vmatpush2.msra.mxu0 %v1277
    %1429 = vmatprep.subr.mxu0 %v1276
    %1430 = vmatpush2.msra.mxu0 %v1275
    %1431 = vmatprep.subr.mxu0 %v1274
    %1432 = vmatpush2.msra.mxu0 %v1273
    %1433 = vmatprep.subr.mxu0 %v1272
    %1434 = vmatpush2.msra.mxu0 %v1271
    %1435 = vmatprep.subr.mxu0 %v1270
    %1436 = vmatpush2.msra.mxu0 %v1269
    %1437 = vmatprep.subr.mxu0 %v1268
    %1438 = vmatpush2.msra.mxu0 %v1267
    %1439 = vmatprep.mubr.f32.mxu0 %v1228
    %1440 = vmatmul.mubr.f32.gmra.mxu0 %v1227
    %v1441 = vpop.f32.mrf.mxu0
    %v1442 = vadd.f32 %v1368, %v1441
    %v1443 = vpop.f32.mrf.mxu0
    %v1444 = vadd.f32 %v1372, %v1443
    %1445 = vdwg.mxu0
    %1446 = vmatprep.subr.mxu0 %v1330
    %1447 = vmatpush1.msra.mxu0 %v1329
    %1448 = vmatprep.subr.mxu0 %v1328
    %1449 = vmatpush1.msra.mxu0 %v1327
    %1450 = vmatprep.subr.mxu0 %v1326
    %1451 = vmatpush1.msra.mxu0 %v1325
    %1452 = vmatprep.subr.mxu0 %v1324
    %1453 = vmatpush1.msra.mxu0 %v1323
    %1454 = vmatprep.subr.mxu0 %v1322
    %1455 = vmatpush1.msra.mxu0 %v1321
    %1456 = vmatprep.subr.mxu0 %v1320
    %1457 = vmatpush1.msra.mxu0 %v1319
    %1458 = vmatprep.subr.mxu0 %v1318
    %1459 = vmatpush1.msra.mxu0 %v1317
    %1460 = vmatprep.subr.mxu0 %v1316
    %1461 = vmatpush1.msra.mxu0 %v1315
    %1462 = vmatprep.subr.mxu0 %v1314
    %1463 = vmatpush1.msra.mxu0 %v1313
    %1464 = vmatprep.subr.mxu0 %v1312
    %1465 = vmatpush1.msra.mxu0 %v1311
    %1466 = vmatprep.subr.mxu0 %v1310
    %1467 = vmatpush1.msra.mxu0 %v1309
    %1468 = vmatprep.subr.mxu0 %v1308
    %1469 = vmatpush1.msra.mxu0 %v1307
    %1470 = vmatprep.subr.mxu0 %v1306
    %1471 = vmatpush1.msra.mxu0 %v1305
    %1472 = vmatprep.subr.mxu0 %v1304
    %1473 = vmatpush1.msra.mxu0 %v1303
    %1474 = vmatprep.subr.mxu0 %v1302
    %1475 = vmatpush1.msra.mxu0 %v1301
    %1476 = vmatprep.subr.mxu0 %v1300
    %1477 = vmatpush1.msra.mxu0 %v1299
    %1478 = vmatprep.subr.mxu0 %v1362
    %1479 = vmatpush2.msra.mxu0 %v1361
    %1480 = vmatprep.subr.mxu0 %v1360
    %1481 = vmatpush2.msra.mxu0 %v1359
    %1482 = vmatprep.subr.mxu0 %v1358
    %1483 = vmatpush2.msra.mxu0 %v1357
    %1484 = vmatprep.subr.mxu0 %v1356
    %1485 = vmatpush2.msra.mxu0 %v1355
    %1486 = vmatprep.subr.mxu0 %v1354
    %1487 = vmatpush2.msra.mxu0 %v1353
    %1488 = vmatprep.subr.mxu0 %v1352
    %1489 = vmatpush2.msra.mxu0 %v1351
    %1490 = vmatprep.subr.mxu0 %v1350
    %1491 = vmatpush2.msra.mxu0 %v1349
    %1492 = vmatprep.subr.mxu0 %v1348
    %1493 = vmatpush2.msra.mxu0 %v1347
    %1494 = vmatprep.subr.mxu0 %v1346
    %1495 = vmatpush2.msra.mxu0 %v1345
    %1496 = vmatprep.subr.mxu0 %v1344
    %1497 = vmatpush2.msra.mxu0 %v1343
    %1498 = vmatprep.subr.mxu0 %v1342
    %1499 = vmatpush2.msra.mxu0 %v1341
    %1500 = vmatprep.subr.mxu0 %v1340
    %1501 = vmatpush2.msra.mxu0 %v1339
    %1502 = vmatprep.subr.mxu0 %v1338
    %1503 = vmatpush2.msra.mxu0 %v1337
    %1504 = vmatprep.subr.mxu0 %v1336
    %1505 = vmatpush2.msra.mxu0 %v1335
    %1506 = vmatprep.subr.mxu0 %v1334
    %1507 = vmatpush2.msra.mxu0 %v1333
    %1508 = vmatprep.subr.mxu0 %v1332
    %1509 = vmatpush2.msra.mxu0 %v1331
    %1510 = vmatprep.mubr.f32.mxu0 %v1230
    %1511 = vmatmul.mubr.f32.gmra.mxu0 %v1229
    %v1512 = vpop.f32.mrf.mxu0
    %v1513 = vadd.f32 %v1442, %v1512
    %v1514 = vpop.f32.mrf.mxu0
    %v1515 = vadd.f32 %v1444, %v1514
    %1516 = vdwg.mxu0
    %v1517 = vmax.f32 %v1513, 0.0
    %v1518 = vmax.f32 %v1515, 0.0
    %v1519 = vld [vmem:[#allocation11] sm:$0xff]
    %v1520 = vld [vmem:[#allocation11 + $0x8] sm:$0xff]
    %v1521 = vld [vmem:[#allocation11 + $0x10] sm:$0xff]
    %v1522 = vld [vmem:[#allocation11 + $0x18] sm:$0xff]
    %v1523 = vld [vmem:[#allocation11 + $0x20] sm:$0xff]
    %v1524 = vld [vmem:[#allocation11 + $0x28] sm:$0xff]
    %v1525 = vld [vmem:[#allocation11 + $0x30] sm:$0xff]
    %v1526 = vld [vmem:[#allocation11 + $0x38] sm:$0xff]
    %v1527 = vld [vmem:[#allocation11 + $0x40] sm:$0xff]
    %v1528 = vld [vmem:[#allocation11 + $0x48] sm:$0xff]
    %v1529 = vld [vmem:[#allocation11 + $0x50] sm:$0xff]
    %v1530 = vld [vmem:[#allocation11 + $0x58] sm:$0xff]
    %v1531 = vld [vmem:[#allocation11 + $0x60] sm:$0xff]
    %v1532 = vld [vmem:[#allocation11 + $0x68] sm:$0xff]
    %v1533 = vld [vmem:[#allocation11 + $0x70] sm:$0xff]
    %v1534 = vld [vmem:[#allocation11 + $0x78] sm:$0xff]
    %v1535 = vld [vmem:[#allocation11 + $0x80] sm:$0xff]
    %v1536 = vld [vmem:[#allocation11 + $0x88] sm:$0xff]
    %v1537 = vld [vmem:[#allocation11 + $0x90] sm:$0xff]
    %v1538 = vld [vmem:[#allocation11 + $0x98] sm:$0xff]
    %v1539 = vld [vmem:[#allocation11 + $0xa0] sm:$0xff]
    %v1540 = vld [vmem:[#allocation11 + $0xa8] sm:$0xff]
    %v1541 = vld [vmem:[#allocation11 + $0xb0] sm:$0xff]
    %v1542 = vld [vmem:[#allocation11 + $0xb8] sm:$0xff]
    %v1543 = vld [vmem:[#allocation11 + $0xc0] sm:$0xff]
    %v1544 = vld [vmem:[#allocation11 + $0xc8] sm:$0xff]
    %v1545 = vld [vmem:[#allocation11 + $0xd0] sm:$0xff]
    %v1546 = vld [vmem:[#allocation11 + $0xd8] sm:$0xff]
    %v1547 = vld [vmem:[#allocation11 + $0xe0] sm:$0xff]
    %v1548 = vld [vmem:[#allocation11 + $0xe8] sm:$0xff]
    %v1549 = vld [vmem:[#allocation11 + $0xf0] sm:$0xff]
    %v1550 = vld [vmem:[#allocation11 + $0xf8] sm:$0xff]
    %v1551 = vld [vmem:[#allocation13] sm:$0x1]
    %v1553 = vlaneseq
    %v1554 = vshrl.u32 %v1553, 7
    %v1555 = vsub.s32 0, %v1554
    %v1556 = vrot.slane %v1551, %v1555
    %1558 = vmatprep.subr.mxu0 0.0
    %1559 = vmatpush1.msra.mxu0 %v1534
    %1560 = vmatprep.subr.mxu0 0.0
    %1561 = vmatpush1.msra.mxu0 %v1533
    %1562 = vmatprep.subr.mxu0 0.0
    %1563 = vmatpush1.msra.mxu0 %v1532
    %1564 = vmatprep.subr.mxu0 0.0
    %1565 = vmatpush1.msra.mxu0 %v1531
    %1566 = vmatprep.subr.mxu0 0.0
    %1567 = vmatpush1.msra.mxu0 %v1530
    %1568 = vmatprep.subr.mxu0 0.0
    %1569 = vmatpush1.msra.mxu0 %v1529
    %1570 = vmatprep.subr.mxu0 0.0
    %1571 = vmatpush1.msra.mxu0 %v1528
    %1572 = vmatprep.subr.mxu0 0.0
    %1573 = vmatpush1.msra.mxu0 %v1527
    %1574 = vmatprep.subr.mxu0 0.0
    %1575 = vmatpush1.msra.mxu0 %v1526
    %1576 = vmatprep.subr.mxu0 0.0
    %1577 = vmatpush1.msra.mxu0 %v1525
    %1578 = vmatprep.subr.mxu0 0.0
    %1579 = vmatpush1.msra.mxu0 %v1524
    %1580 = vmatprep.subr.mxu0 0.0
    %1581 = vmatpush1.msra.mxu0 %v1523
    %1582 = vmatprep.subr.mxu0 0.0
    %1583 = vmatpush1.msra.mxu0 %v1522
    %1584 = vmatprep.subr.mxu0 0.0
    %1585 = vmatpush1.msra.mxu0 %v1521
    %1586 = vmatprep.subr.mxu0 0.0
    %1587 = vmatpush1.msra.mxu0 %v1520
    %1588 = vmatprep.subr.mxu0 0.0
    %1589 = vmatpush1.msra.mxu0 %v1519
    %1590 = vmatprep.subr.mxu0 0.0
    %1591 = vmatpush2.msra.mxu0 %v1550
    %1592 = vmatprep.subr.mxu0 0.0
    %1593 = vmatpush2.msra.mxu0 %v1549
    %1594 = vmatprep.subr.mxu0 0.0
    %1595 = vmatpush2.msra.mxu0 %v1548
    %1596 = vmatprep.subr.mxu0 0.0
    %1597 = vmatpush2.msra.mxu0 %v1547
    %1598 = vmatprep.subr.mxu0 0.0
    %1599 = vmatpush2.msra.mxu0 %v1546
    %1600 = vmatprep.subr.mxu0 0.0
    %1601 = vmatpush2.msra.mxu0 %v1545
    %1602 = vmatprep.subr.mxu0 0.0
    %1603 = vmatpush2.msra.mxu0 %v1544
    %1604 = vmatprep.subr.mxu0 0.0
    %1605 = vmatpush2.msra.mxu0 %v1543
    %1606 = vmatprep.subr.mxu0 0.0
    %1607 = vmatpush2.msra.mxu0 %v1542
    %1608 = vmatprep.subr.mxu0 0.0
    %1609 = vmatpush2.msra.mxu0 %v1541
    %1610 = vmatprep.subr.mxu0 0.0
    %1611 = vmatpush2.msra.mxu0 %v1540
    %1612 = vmatprep.subr.mxu0 0.0
    %1613 = vmatpush2.msra.mxu0 %v1539
    %1614 = vmatprep.subr.mxu0 0.0
    %1615 = vmatpush2.msra.mxu0 %v1538
    %1616 = vmatprep.subr.mxu0 0.0
    %1617 = vmatpush2.msra.mxu0 %v1537
    %1618 = vmatprep.subr.mxu0 0.0
    %1619 = vmatpush2.msra.mxu0 %v1536
    %1620 = vmatprep.subr.mxu0 0.0
    %1621 = vmatpush2.msra.mxu0 %v1535
    %1622 = vmatprep.mubr.f32.mxu0 %v1518
    %1623 = vmatmul.mubr.f32.gmra.mxu0 %v1517
    %v1624 = vpop.f32.mrf.mxu0
    %v1625 = vadd.f32 %v1556, %v1624
    %v1626 = vpop.f32.mrf.mxu0
    %1627 = vdwg.mxu0
    %1628 = vst [vmem:[#allocation15] sm:$0xff] %v1625
    // Predicated region
    $region58: #{tpu_custom_call.1} parent=1 // pred_check
      _
    $region59: #{tpu_custom_call.1} parent=1 // pred_check_branch
      %1630 = sbr.rel (0) target = $region61
    $region60: #{tpu_custom_call.1} parent=1 // pred_region
      %s1632 = ssub.s32 512, 512
      %1633 = vsyncadd [#allocation4], %s1632
      %s1635 = sshll.u32 [#allocation14], 4
      %s1636 = int_to_ptr.vmem [resolvable:$true] %s1635
      %1638 = dma.vmem_to_hbm [thread:$0]  %s1636, 512, %s7, [#allocation4]
    $region61: #{tpu_custom_call.1} parent=1 // pred_fallthru
      _
    // Predicated region
    $region62: #{tpu_custom_call.1} parent=1 // pred_check
      _
    $region63: #{tpu_custom_call.1} parent=1 // pred_check_branch
      %1640 = sbr.rel (0) target = $region65
    $region64: #{tpu_custom_call.1} parent=1 // pred_region
      %s1642 = ssub.s32 128, 128
      %1643 = vsyncadd [#allocation16], %s1642
      %s1645 = sshll.u32 [#allocation15], 4
      %s1646 = int_to_ptr.vmem [resolvable:$true] %s1645
      %1648 = dma.vmem_to_hbm [thread:$0]  %s1646, 128, %s8, [#allocation16]
    $region65: #{tpu_custom_call.1} parent=1 // pred_fallthru
      _
    // Predicated region
    $region66: #{tpu_custom_call.1} parent=1 // pred_check
      _
    $region67: #{tpu_custom_call.1} parent=1 // pred_check_branch
      %1650 = sbr.rel (0) target = $region69
    $region68: #{tpu_custom_call.1} parent=1 // pred_region
      %1651 = dma.done [#allocation4], 512
    $region69: #{tpu_custom_call.1} parent=1 // pred_fallthru
      _
    // Predicated region
    $region70: #{tpu_custom_call.1} parent=1 // pred_check
      _
    $region71: #{tpu_custom_call.1} parent=1 // pred_check_branch
      %1653 = sbr.rel (0) target = $region73
    $region72: #{tpu_custom_call.1} parent=1 // pred_region
      %1654 = dma.done [#allocation16], 128
    $region73: #{tpu_custom_call.1} parent=1 // pred_fallthru
      _
    %1655 = vsyncpa [#allocation3], 1
    %1656 = vsyncpa [#allocation6], 1
    %1657 = vsyncpa [#allocation9], 1
    %1658 = vsyncpa [#allocation12], 1
    %1659 = vsyncpa [#allocation4], 1
    %1660 = vsyncpa [#allocation16], 1

</llo_original>
